<compile_context>
chip_gen: v6e
topology: v6e:2x2x1
jax: 0.10.0
libtpu: 0.0.40
codegen_flags: <defaults>
</compile_context>

<pallas_src>
import functools

import jax
import jax.numpy as jnp
import numpy as np
from jax.experimental import pallas as pl
from jax.experimental.pallas import tpu as pltpu


def _round_up(x, m):
    return (x + m - 1) // m * m


# ------------------------------- fused kernel -------------------------------

def _fused_maskconv_kernel(len1_ref, len2_ref,                      # SMEM prefetch
                           t1_ref, t2_ref, p1_ref, w1_ref, b1_ref,  # inputs
                           w2_ref, b2_ref,
                           o_ref,                                   # output
                           a1_ref, slab_ref,                        # VMEM scratch
                           *, ho1, to1pad, ho2, to2, to2pad, kh2, kw2, sh2, ph2,
                           min_val, max_val):
    """One batch element: Conv+BN+Hardtanh+mask -> Conv+BN+Hardtanh+mask."""
    b = pl.program_id(0)
    l1 = len1_ref[b]                       # seq length after block 1
    l2 = len2_ref[b]                       # seq length after block 2
    c1 = a1_ref.shape[0]

    # ---- Block 1: one lane-dense matmul over all output rows at once.
    # p1_ref block: (1, K1, Ho1*To1pad); weights already carry the BN scale.
    a1 = jnp.dot(w1_ref[...], p1_ref[0], preferred_element_type=jnp.float32)
    a1 = jnp.clip(a1 + b1_ref[...], min_val, max_val)          # BN shift + Hardtanh
    # MaskConv mask #1; padding lanes carry a huge t-index so they go to zero
    # too (block 2 reads them as its zero time-padding).
    a1 = jnp.where(t1_ref[...] >= l1, 0.0, a1)
    a1_ref[...] = a1                                             # (C1, Ho1*To1pad)

    # ---- Block 2 patch slab: (kh2*kw2*C1, Ho2*To2pad).  Every section is
    # written every grid step (data or explicit zeros for height padding), so
    # there is no cross-step scratch dependence and no full zero sweep.
    # TODO(synk): at realistic Ho2 (~41) switch this unrolled loop to
    # lax.fori_loop / a second grid axis to bound code size and vreg pressure.
    for i in range(kh2):
        for j in range(kw2):
            r0 = (i * kw2 + j) * c1
            for ho in range(ho2):
                h_in = sh2 * ho + i - ph2
                lo = ho * to2pad                                  # 128-aligned
                if 0 <= h_in < ho1:
                    src = h_in * to1pad + j
                    slab_ref[r0:r0 + c1, lo:lo + to2] = a1_ref[:, src:src + to2]
                else:                                             # height padding
                    slab_ref[r0:r0 + c1, lo:lo + to2] = jnp.zeros(
                        (c1, to2), jnp.float32)

    # ---- Block 2: one matmul (C2, 72) @ (72, Ho2*To2pad), single epilogue,
    # single lane-dense aligned store.
    out = jnp.dot(w2_ref[...], slab_ref[...], preferred_element_type=jnp.float32)
    out = jnp.clip(out + b2_ref[...], min_val, max_val)
    out = jnp.where(t2_ref[...] >= l2, 0.0, out)                  # MaskConv mask #2
    o_ref[0] = out


def fused_maskconv(p1, t1, t2, w1_mat, b1_col, w2_mat, b2_col, len1, len2, *,
                   ho1, to1pad, ho2, to2, to2pad, kh2, kw2, sh2, ph2,
                   min_val=0.0, max_val=20.0):
    """p1: (B, K1, Ho1*To1pad); w1_mat: (C1, K1); w2_mat: (C2, kh*kw*C1)."""
    B, K1, P1 = p1.shape
    C1 = w1_mat.shape[0]
    C2, K2 = w2_mat.shape
    P2 = ho2 * to2pad

    kernel = functools.partial(
        _fused_maskconv_kernel,
        ho1=ho1, to1pad=to1pad, ho2=ho2, to2=to2, to2pad=to2pad,
        kh2=kh2, kw2=kw2, sh2=sh2, ph2=ph2, min_val=min_val, max_val=max_val)

    cost = pl.CostEstimate(
        flops=2 * B * (C1 * K1 * P1 + C2 * K2 * P2),
        transcendentals=0,
        bytes_accessed=4 * (p1.size + t1.size + t2.size + w1_mat.size
                            + b1_col.size + w2_mat.size + b2_col.size
                            + B * C2 * P2))

    return pl.pallas_call(
        kernel,
        out_shape=jax.ShapeDtypeStruct((B, C2, P2), jnp.float32),
        grid_spec=pltpu.PrefetchScalarGridSpec(
            num_scalar_prefetch=2,                     # len1, len2 -> SMEM
            grid=(B,),
            in_specs=[
                pl.BlockSpec((1, P1), lambda b, l1, l2: (0, 0)),        # t-idx map 1
                pl.BlockSpec((1, P2), lambda b, l1, l2: (0, 0)),        # t-idx map 2
                pl.BlockSpec((1, K1, P1), lambda b, l1, l2: (b, 0, 0)),  # patches
                pl.BlockSpec((C1, K1), lambda b, l1, l2: (0, 0)),        # W1 (BN folded)
                pl.BlockSpec((C1, 1), lambda b, l1, l2: (0, 0)),         # BN shift 1
                pl.BlockSpec((C2, K2), lambda b, l1, l2: (0, 0)),        # W2 flat
                pl.BlockSpec((C2, 1), lambda b, l1, l2: (0, 0)),         # BN shift 2
            ],
            out_specs=pl.BlockSpec((1, C2, P2), lambda b, l1, l2: (b, 0, 0)),
            scratch_shapes=[
                pltpu.VMEM((C1, P1), jnp.float32),     # block-1 activation (flat)
                pltpu.VMEM((K2, P2), jnp.float32),     # block-2 patch slab
            ],
        ),
        compiler_params=pltpu.CompilerParams(
            dimension_semantics=("parallel",)),
        cost_estimate=cost,
    )(len1, len2, t1, t2, p1, w1_mat, b1_col, w2_mat, b2_col)


# ----------------------------- glue (plain JAX) -----------------------------

def extract_patches(x, kh, kw, sh, sw, ph, pw):
    """x: (B, C, H, T) NCHW -> patches (B, C*kh*kw, Ho, To), time lane-dense."""
    B, C, H, T = x.shape
    xp = jnp.pad(x, ((0, 0), (0, 0), (ph, ph), (pw, pw)))
    Ho = (H + 2 * ph - kh) // sh + 1
    To = (T + 2 * pw - kw) // sw + 1
    taps = []
    for i in range(kh):
        for j in range(kw):
            taps.append(xp[:, :, i:i + (Ho - 1) * sh + 1:sh,
                              j:j + (To - 1) * sw + 1:sw])          # (B, C, Ho, To)
    p = jnp.stack(taps, axis=2)                                     # (B, C, kh*kw, Ho, To)
    return p.reshape(B, C * kh * kw, Ho, To), Ho, To


def conv_seq_lengths(seq_lengths, kernel_w, stride_w, pad_w, dil_w=1):
    """get_sequence_lengths() for nn.Conv2d (time axis = index 1 of k/s/p)."""
    numerator = seq_lengths + 2 * pad_w - dil_w * (kernel_w - 1) - 1
    return (numerator // stride_w + 1).astype(jnp.int32)
    # TODO(synk): nn.MaxPool2d branch (seq_lengths >>= 1) unused by this sequential.


def mask_conv_forward(x, seq_lengths, blocks):
    """Fused Pallas MaskConv forward for the 2-block Conv+BN+Hardtanh sequential."""
    assert len(blocks) == 2, "fused kernel is specialised to two conv blocks"
    (w1, scale1, shift1, stride1, pad1), (w2, scale2, shift2, stride2, pad2) = blocks
    assert stride2[1] == 1, "block-2 time stride must be 1 for the fused kernel"
    B, Cin, H, T = x.shape
    C1, C2 = w1.shape[0], w2.shape[0]
    kh1, kw1 = w1.shape[2], w1.shape[3]
    kh2, kw2 = w2.shape[2], w2.shape[3]
    sh1, sw1 = stride1
    sh2, sw2 = stride2
    ph1, pw1 = pad1
    ph2, pw2 = pad2

    patches, Ho1, To1 = extract_patches(x, kh1, kw1, sh1, sw1, ph1, pw1)
    Ho2 = (Ho1 + 2 * ph2 - kh2) // sh2 + 1
    To2 = (To1 + 2 * pw2 - kw2) // sw2 + 1
    len1 = conv_seq_lengths(seq_lengths, kw1, sw1, pw1)
    len2 = conv_seq_lengths(len1, kw2, sw2, pw2)

    # Per-height-row lane chunks, padded to 128 multiples for aligned slices /
    # aligned stores; To1 chunk also carries block-2's time padding (pw2).
    To1pad = _round_up(To1 + 2 * pw2, 128)
    To2pad = _round_up(To2, 128)
    P1 = Ho1 * To1pad
    P2 = Ho2 * To2pad
    K1 = Cin * kh1 * kw1
    K2 = kh2 * kw2 * C1

    # Block-1 patches in the flat lane-dense layout: real time t of height row
    # h lives at lane h*To1pad + pw2 + t; all other lanes are zero.
    p1 = jnp.zeros((B, K1, Ho1, To1pad), jnp.float32)
    p1 = p1.at[:, :, :, pw2:pw2 + To1].set(patches)
    p1 = p1.reshape(B, K1, P1)

    # Per-lane time-index maps (shape constants). Padding lanes get a huge
    # sentinel so the in-kernel seq-length mask also zeroes them.
    BIG = np.int32(2 ** 30)
    t1 = np.full((1, P1), BIG, dtype=np.int32)
    t2 = np.full((1, P2), BIG, dtype=np.int32)
    for h in range(Ho1):
        t1[0, h * To1pad + pw2:h * To1pad + pw2 + To1] = np.arange(To1, dtype=np.int32)
    for h in range(Ho2):
        t2[0, h * To2pad:h * To2pad + To2] = np.arange(To2, dtype=np.int32)
    t1 = jnp.asarray(t1)
    t2 = jnp.asarray(t2)

    # Fold eval-mode BN scale into the conv weights; kernel only adds the shift.
    w1_mat = (w1 * scale1[:, None, None, None]).reshape(C1, K1)             # (C1, K1)
    b1_col = shift1.reshape(C1, 1)
    w2_mat = (w2 * scale2[:, None, None, None]).transpose(0, 2, 3, 1)        # (C2,kh,kw,C1)
    w2_mat = w2_mat.reshape(C2, K2)                                          # (C2, 72)
    b2_col = shift2.reshape(C2, 1)

    y = fused_maskconv(p1, t1, t2, w1_mat, b1_col, w2_mat, b2_col, len1, len2,
                       ho1=Ho1, to1pad=To1pad, ho2=Ho2, to2=To2, to2pad=To2pad,
                       kh2=kh2, kw2=kw2, sh2=sh2, ph2=ph2)    # (B, C2, Ho2*To2pad)
    out = y.reshape(B, C2, Ho2, To2pad)[:, :, :, :To2]         # slice lane padding
    return out, len2


# ------------------------------ reference & test -----------------------------

def reference_forward(x, seq_lengths, blocks):
    """Pure-JAX reference of the PyTorch MaskConv semantics (eval-mode BN)."""
    out = x
    lengths = seq_lengths
    for (w, scale, shift, stride, pad) in blocks:
        out = jax.lax.conv_general_dilated(
            out, w, window_strides=stride,
            padding=[(pad[0], pad[0]), (pad[1], pad[1])],
            dimension_numbers=("NCHW", "OIHW", "NCHW"),
            precision=jax.lax.Precision.HIGHEST)
        lengths = conv_seq_lengths(lengths, w.shape[3], stride[1], pad[1])
        out = out * scale[None, :, None, None] + shift[None, :, None, None]
        out = jnp.clip(out, 0.0, 20.0)
        T = out.shape[3]
        mask = jnp.arange(T)[None, :] >= lengths[:, None]                 # (B, T)
        out = jnp.where(mask[:, None, None, :], 0.0, out)
    return out, lengths


def make_bn(c, base):
    gamma = 1.0 + 0.1 * (jnp.arange(c, dtype=jnp.float32) + base)
    beta = 0.05 * (jnp.arange(c, dtype=jnp.float32) - base)
    mean = 0.01 * jnp.arange(c, dtype=jnp.float32)
    var = 1.0 + 0.02 * jnp.arange(c, dtype=jnp.float32)
    eps = 1e-5
    scale = gamma / jnp.sqrt(var + eps)
    shift = beta - mean * scale
    return scale, shift


if __name__ == "__main__":
    key = jax.random.PRNGKey(0)
    k_x, k_w1, k_w2 = jax.random.split(key, 3)

    # Input: (B, C, H=hidden_dim, T=seq_len)
    B, Cin, H, T = 2, 1, 16, 16
    x = jax.random.normal(k_x, (B, Cin, H, T), dtype=jnp.float32)
    seq_lengths = jnp.array([16, 11], dtype=jnp.int32)

    # Block 1: Conv2d(1->8, k=(3,3), s=(2,2), p=(1,1), bias=False) + BN(8) + Hardtanh(0,20)
    C1 = 8
    w1 = 0.1 * jax.random.normal(k_w1, (C1, Cin, 3, 3), dtype=jnp.float32)
    scale1, shift1 = make_bn(C1, 0.0)

    # Block 2: Conv2d(8->8, k=(3,3), s=(2,1), p=(1,1), bias=False) + BN(8) + Hardtanh(0,20)
    C2 = 8
    w2 = 0.1 * jax.random.normal(k_w2, (C2, C1, 3, 3), dtype=jnp.float32)
    scale2, shift2 = make_bn(C2, 1.0)

    blocks = [
        (w1, scale1, shift1, (2, 2), (1, 1)),
        (w2, scale2, shift2, (2, 1), (1, 1)),
    ]

    out, out_lengths = mask_conv_forward(x, seq_lengths, blocks)
    out = jax.block_until_ready(out)
    out_lengths = jax.block_until_ready(out_lengths)

    ref_out, ref_lengths = reference_forward(x, seq_lengths, blocks)
    np.testing.assert_allclose(np.asarray(out), np.asarray(ref_out),
                               rtol=2e-2, atol=2e-2)
    assert (np.asarray(out_lengths) == np.asarray(ref_lengths)).all()

    print("KERNEL_OK")
</pallas_src>

<mosaic_0001>
module attributes {stable_mosaic.version = 11 : i64} {
  func.func @_fused_maskconv_kernel(%arg0: i32, %arg1: memref<2xi32, #tpu.memory_space<smem>>, %arg2: memref<2xi32, #tpu.memory_space<smem>>, %arg3: memref<1x1024xi32, #tpu.memory_space<vmem>>, %arg4: memref<1x512xi32, #tpu.memory_space<vmem>>, %arg5: memref<1x9x1024xf32, #tpu.memory_space<vmem>>, %arg6: memref<8x9xf32, #tpu.memory_space<vmem>>, %arg7: memref<8x1xf32, #tpu.memory_space<vmem>>, %arg8: memref<8x72xf32, #tpu.memory_space<vmem>>, %arg9: memref<8x1xf32, #tpu.memory_space<vmem>>, %arg10: memref<1x8x512xf32, #tpu.memory_space<vmem>>, %arg11: memref<8x1024xf32, #tpu.memory_space<vmem>>, %arg12: memref<72x512xf32, #tpu.memory_space<vmem>>) attributes {dimension_semantics = [#tpu.dimension_semantics<parallel>], iteration_bounds = array<i64: 2>, scalar_prefetch = 2 : i64, scratch_operands = 2 : i64, tpu.core_type = #tpu.core_type<tc>, window_params = [{pipeline_mode = #tpu.pipeline_mode<synchronous>, transform_indices = @transform_0, window_bounds = array<i64: 1, 1024>}, {pipeline_mode = #tpu.pipeline_mode<synchronous>, transform_indices = @transform_1, window_bounds = array<i64: 1, 512>}, {transform_indices = @transform_2, window_bounds = array<i64: 1, 9, 1024>}, {pipeline_mode = #tpu.pipeline_mode<synchronous>, transform_indices = @transform_3, window_bounds = array<i64: 8, 9>}, {pipeline_mode = #tpu.pipeline_mode<synchronous>, transform_indices = @transform_4, window_bounds = array<i64: 8, 1>}, {pipeline_mode = #tpu.pipeline_mode<synchronous>, transform_indices = @transform_5, window_bounds = array<i64: 8, 72>}, {pipeline_mode = #tpu.pipeline_mode<synchronous>, transform_indices = @transform_6, window_bounds = array<i64: 8, 1>}, {transform_indices = @transform_7, window_bounds = array<i64: 1, 8, 512>}]} {
    %0 = arith.index_cast %arg0 : i32 to index
    %1 = memref.load %arg1[%0] : memref<2xi32, #tpu.memory_space<smem>>
    %2 = arith.index_cast %arg0 : i32 to index
    %3 = memref.load %arg2[%2] : memref<2xi32, #tpu.memory_space<smem>>
    %c0 = arith.constant 0 : index
    %c0_0 = arith.constant 0 : index
    %4 = vector.load %arg6[%c0, %c0_0] : memref<8x9xf32, #tpu.memory_space<vmem>>, vector<8x9xf32>
    %c0_1 = arith.constant 0 : index
    %c0_2 = arith.constant 0 : index
    %c0_3 = arith.constant 0 : index
    %5 = vector.load %arg5[%c0_1, %c0_2, %c0_3] : memref<1x9x1024xf32, #tpu.memory_space<vmem>>, vector<1x9x1024xf32>
    %6 = vector.shape_cast %5 : vector<1x9x1024xf32> to vector<9x1024xf32>
    %cst = arith.constant dense<0.000000e+00> : vector<8x1024xf32>
    %7 = tpu.matmul %4, %6, %cst {dimension_numbers = #tpu.dot_dimension_numbers<[1], [0], [0], [1], [0, 0, 1, 1], [], []>} : vector<8x9xf32>, vector<9x1024xf32>, vector<8x1024xf32> -> vector<8x1024xf32>
    %c0_4 = arith.constant 0 : index
    %c0_5 = arith.constant 0 : index
    %8 = vector.load %arg7[%c0_4, %c0_5] : memref<8x1xf32, #tpu.memory_space<vmem>>, vector<8x1xf32>
    %9 = vector.broadcast %8 : vector<8x1xf32> to vector<8x1024xf32>
    %10 = arith.addf %7, %9 : vector<8x1024xf32>
    %cst_6 = arith.constant 0.000000e+00 : f32
    %cst_7 = arith.constant 2.000000e+01 : f32
    %11 = vector.broadcast %cst_6 : f32 to vector<8x1024xf32>
    %12 = arith.maximumf %11, %10 : vector<8x1024xf32>
    %13 = vector.broadcast %cst_7 : f32 to vector<8x1024xf32>
    %14 = arith.minimumf %13, %12 : vector<8x1024xf32>
    %c0_8 = arith.constant 0 : index
    %c0_9 = arith.constant 0 : index
    %15 = vector.load %arg3[%c0_8, %c0_9] : memref<1x1024xi32, #tpu.memory_space<vmem>>, vector<1x1024xi32>
    %16 = vector.broadcast %1 : i32 to vector<1x1024xi32>
    %17 = arith.cmpi sge, %15, %16 : vector<1x1024xi32>
    %cst_10 = arith.constant 0.000000e+00 : f32
    %18 = vector.shape_cast %17 : vector<1x1024xi1> to vector<1x1024xi1>
    %19 = vector.broadcast %18 : vector<1x1024xi1> to vector<8x1024xi1>
    %20 = vector.broadcast %cst_10 : f32 to vector<8x1024xf32>
    %21 = arith.select %19, %20, %14 : vector<8x1024xi1>, vector<8x1024xf32>
    %c0_11 = arith.constant 0 : index
    %c0_12 = arith.constant 0 : index
    %22 = vector.load %arg11[%c0_11, %c0_12] : memref<8x1024xf32, #tpu.memory_space<vmem>>, vector<8x1024xf32>
    tpu.vector_store %arg11[%c0_11, %c0_12], %21 {strides = array<i32>} : memref<8x1024xf32, #tpu.memory_space<vmem>>, vector<8x1024xf32>,
    %cst_13 = arith.constant 0.000000e+00 : f32
    %23 = vector.broadcast %cst_13 : f32 to vector<8x8xf32>
    %c0_14 = arith.constant 0 : index
    %c0_15 = arith.constant 0 : index
    %24 = vector.load %arg12[%c0_14, %c0_15] : memref<72x512xf32, #tpu.memory_space<vmem>>, vector<8x8xf32>
    tpu.vector_store %arg12[%c0_14, %c0_15], %23 {strides = array<i32>} : memref<72x512xf32, #tpu.memory_space<vmem>>, vector<8x8xf32>,
    %c0_16 = arith.constant 0 : index
    %c128 = arith.constant 128 : index
    %25 = vector.load %arg11[%c0_16, %c128] : memref<8x1024xf32, #tpu.memory_space<vmem>>, vector<8x8xf32>
    %c0_17 = arith.constant 0 : index
    %c128_18 = arith.constant 128 : index
    %26 = vector.load %arg12[%c0_17, %c128_18] : memref<72x512xf32, #tpu.memory_space<vmem>>, vector<8x8xf32>
    tpu.vector_store %arg12[%c0_17, %c128_18], %25 {strides = array<i32>} : memref<72x512xf32, #tpu.memory_space<vmem>>, vector<8x8xf32>,
    %c0_19 = arith.constant 0 : index
    %c384 = arith.constant 384 : index
    %27 = vector.load %arg11[%c0_19, %c384] : memref<8x1024xf32, #tpu.memory_space<vmem>>, vector<8x8xf32>
    %c0_20 = arith.constant 0 : index
    %c256 = arith.constant 256 : index
    %28 = vector.load %arg12[%c0_20, %c256] : memref<72x512xf32, #tpu.memory_space<vmem>>, vector<8x8xf32>
    tpu.vector_store %arg12[%c0_20, %c256], %27 {strides = array<i32>} : memref<72x512xf32, #tpu.memory_space<vmem>>, vector<8x8xf32>,
    %c0_21 = arith.constant 0 : index
    %c640 = arith.constant 640 : index
    %29 = vector.load %arg11[%c0_21, %c640] : memref<8x1024xf32, #tpu.memory_space<vmem>>, vector<8x8xf32>
    %c0_22 = arith.constant 0 : index
    %c384_23 = arith.constant 384 : index
    %30 = vector.load %arg12[%c0_22, %c384_23] : memref<72x512xf32, #tpu.memory_space<vmem>>, vector<8x8xf32>
    tpu.vector_store %arg12[%c0_22, %c384_23], %29 {strides = array<i32>} : memref<72x512xf32, #tpu.memory_space<vmem>>, vector<8x8xf32>,
    %cst_24 = arith.constant 0.000000e+00 : f32
    %31 = vector.broadcast %cst_24 : f32 to vector<8x8xf32>
    %c8 = arith.constant 8 : index
    %c0_25 = arith.constant 0 : index
    %32 = vector.load %arg12[%c8, %c0_25] : memref<72x512xf32, #tpu.memory_space<vmem>>, vector<8x8xf32>
    tpu.vector_store %arg12[%c8, %c0_25], %31 {strides = array<i32>} : memref<72x512xf32, #tpu.memory_space<vmem>>, vector<8x8xf32>,
    %c0_26 = arith.constant 0 : index
    %c129 = arith.constant 129 : index
    %33 = vector.load %arg11[%c0_26, %c129] : memref<8x1024xf32, #tpu.memory_space<vmem>>, vector<8x8xf32>
    %c8_27 = arith.constant 8 : index
    %c128_28 = arith.constant 128 : index
    %34 = vector.load %arg12[%c8_27, %c128_28] : memref<72x512xf32, #tpu.memory_space<vmem>>, vector<8x8xf32>
    tpu.vector_store %arg12[%c8_27, %c128_28], %33 {strides = array<i32>} : memref<72x512xf32, #tpu.memory_space<vmem>>, vector<8x8xf32>,
    %c0_29 = arith.constant 0 : index
    %c385 = arith.constant 385 : index
    %35 = vector.load %arg11[%c0_29, %c385] : memref<8x1024xf32, #tpu.memory_space<vmem>>, vector<8x8xf32>
    %c8_30 = arith.constant 8 : index
    %c256_31 = arith.constant 256 : index
    %36 = vector.load %arg12[%c8_30, %c256_31] : memref<72x512xf32, #tpu.memory_space<vmem>>, vector<8x8xf32>
    tpu.vector_store %arg12[%c8_30, %c256_31], %35 {strides = array<i32>} : memref<72x512xf32, #tpu.memory_space<vmem>>, vector<8x8xf32>,
    %c0_32 = arith.constant 0 : index
    %c641 = arith.constant 641 : index
    %37 = vector.load %arg11[%c0_32, %c641] : memref<8x1024xf32, #tpu.memory_space<vmem>>, vector<8x8xf32>
    %c8_33 = arith.constant 8 : index
    %c384_34 = arith.constant 384 : index
    %38 = vector.load %arg12[%c8_33, %c384_34] : memref<72x512xf32, #tpu.memory_space<vmem>>, vector<8x8xf32>
    tpu.vector_store %arg12[%c8_33, %c384_34], %37 {strides = array<i32>} : memref<72x512xf32, #tpu.memory_space<vmem>>, vector<8x8xf32>,
    %cst_35 = arith.constant 0.000000e+00 : f32
    %39 = vector.broadcast %cst_35 : f32 to vector<8x8xf32>
    %c16 = arith.constant 16 : index
    %c0_36 = arith.constant 0 : index
    %40 = vector.load %arg12[%c16, %c0_36] : memref<72x512xf32, #tpu.memory_space<vmem>>, vector<8x8xf32>
    tpu.vector_store %arg12[%c16, %c0_36], %39 {strides = array<i32>} : memref<72x512xf32, #tpu.memory_space<vmem>>, vector<8x8xf32>,
    %c0_37 = arith.constant 0 : index
    %c130 = arith.constant 130 : index
    %41 = vector.load %arg11[%c0_37, %c130] : memref<8x1024xf32, #tpu.memory_space<vmem>>, vector<8x8xf32>
    %c16_38 = arith.constant 16 : index
    %c128_39 = arith.constant 128 : index
    %42 = vector.load %arg12[%c16_38, %c128_39] : memref<72x512xf32, #tpu.memory_space<vmem>>, vector<8x8xf32>
    tpu.vector_store %arg12[%c16_38, %c128_39], %41 {strides = array<i32>} : memref<72x512xf32, #tpu.memory_space<vmem>>, vector<8x8xf32>,
    %c0_40 = arith.constant 0 : index
    %c386 = arith.constant 386 : index
    %43 = vector.load %arg11[%c0_40, %c386] : memref<8x1024xf32, #tpu.memory_space<vmem>>, vector<8x8xf32>
    %c16_41 = arith.constant 16 : index
    %c256_42 = arith.constant 256 : index
    %44 = vector.load %arg12[%c16_41, %c256_42] : memref<72x512xf32, #tpu.memory_space<vmem>>, vector<8x8xf32>
    tpu.vector_store %arg12[%c16_41, %c256_42], %43 {strides = array<i32>} : memref<72x512xf32, #tpu.memory_space<vmem>>, vector<8x8xf32>,
    %c0_43 = arith.constant 0 : index
    %c642 = arith.constant 642 : index
    %45 = vector.load %arg11[%c0_43, %c642] : memref<8x1024xf32, #tpu.memory_space<vmem>>, vector<8x8xf32>
    %c16_44 = arith.constant 16 : index
    %c384_45 = arith.constant 384 : index
    %46 = vector.load %arg12[%c16_44, %c384_45] : memref<72x512xf32, #tpu.memory_space<vmem>>, vector<8x8xf32>
    tpu.vector_store %arg12[%c16_44, %c384_45], %45 {strides = array<i32>} : memref<72x512xf32, #tpu.memory_space<vmem>>, vector<8x8xf32>,
    %c0_46 = arith.constant 0 : index
    %c0_47 = arith.constant 0 : index
    %47 = vector.load %arg11[%c0_46, %c0_47] : memref<8x1024xf32, #tpu.memory_space<vmem>>, vector<8x8xf32>
    %c24 = arith.constant 24 : index
    %c0_48 = arith.constant 0 : index
    %48 = vector.load %arg12[%c24, %c0_48] : memref<72x512xf32, #tpu.memory_space<vmem>>, vector<8x8xf32>
    tpu.vector_store %arg12[%c24, %c0_48], %47 {strides = array<i32>} : memref<72x512xf32, #tpu.memory_space<vmem>>, vector<8x8xf32>,
    %c0_49 = arith.constant 0 : index
    %c256_50 = arith.constant 256 : index
    %49 = vector.load %arg11[%c0_49, %c256_50] : memref<8x1024xf32, #tpu.memory_space<vmem>>, vector<8x8xf32>
    %c24_51 = arith.constant 24 : index
    %c128_52 = arith.constant 128 : index
    %50 = vector.load %arg12[%c24_51, %c128_52] : memref<72x512xf32, #tpu.memory_space<vmem>>, vector<8x8xf32>
    tpu.vector_store %arg12[%c24_51, %c128_52], %49 {strides = array<i32>} : memref<72x512xf32, #tpu.memory_space<vmem>>, vector<8x8xf32>,
    %c0_53 = arith.constant 0 : index
    %c512 = arith.constant 512 : index
    %51 = vector.load %arg11[%c0_53, %c512] : memref<8x1024xf32, #tpu.memory_space<vmem>>, vector<8x8xf32>
    %c24_54 = arith.constant 24 : index
    %c256_55 = arith.constant 256 : index
    %52 = vector.load %arg12[%c24_54, %c256_55] : memref<72x512xf32, #tpu.memory_space<vmem>>, vector<8x8xf32>
    tpu.vector_store %arg12[%c24_54, %c256_55], %51 {strides = array<i32>} : memref<72x512xf32, #tpu.memory_space<vmem>>, vector<8x8xf32>,
    %c0_56 = arith.constant 0 : index
    %c768 = arith.constant 768 : index
    %53 = vector.load %arg11[%c0_56, %c768] : memref<8x1024xf32, #tpu.memory_space<vmem>>, vector<8x8xf32>
    %c24_57 = arith.constant 24 : index
    %c384_58 = arith.constant 384 : index
    %54 = vector.load %arg12[%c24_57, %c384_58] : memref<72x512xf32, #tpu.memory_space<vmem>>, vector<8x8xf32>
    tpu.vector_store %arg12[%c24_57, %c384_58], %53 {strides = array<i32>} : memref<72x512xf32, #tpu.memory_space<vmem>>, vector<8x8xf32>,
    %c0_59 = arith.constant 0 : index
    %c1 = arith.constant 1 : index
    %55 = vector.load %arg11[%c0_59, %c1] : memref<8x1024xf32, #tpu.memory_space<vmem>>, vector<8x8xf32>
    %c32 = arith.constant 32 : index
    %c0_60 = arith.constant 0 : index
    %56 = vector.load %arg12[%c32, %c0_60] : memref<72x512xf32, #tpu.memory_space<vmem>>, vector<8x8xf32>
    tpu.vector_store %arg12[%c32, %c0_60], %55 {strides = array<i32>} : memref<72x512xf32, #tpu.memory_space<vmem>>, vector<8x8xf32>,
    %c0_61 = arith.constant 0 : index
    %c257 = arith.constant 257 : index
    %57 = vector.load %arg11[%c0_61, %c257] : memref<8x1024xf32, #tpu.memory_space<vmem>>, vector<8x8xf32>
    %c32_62 = arith.constant 32 : index
    %c128_63 = arith.constant 128 : index
    %58 = vector.load %arg12[%c32_62, %c128_63] : memref<72x512xf32, #tpu.memory_space<vmem>>, vector<8x8xf32>
    tpu.vector_store %arg12[%c32_62, %c128_63], %57 {strides = array<i32>} : memref<72x512xf32, #tpu.memory_space<vmem>>, vector<8x8xf32>,
    %c0_64 = arith.constant 0 : index
    %c513 = arith.constant 513 : index
    %59 = vector.load %arg11[%c0_64, %c513] : memref<8x1024xf32, #tpu.memory_space<vmem>>, vector<8x8xf32>
    %c32_65 = arith.constant 32 : index
    %c256_66 = arith.constant 256 : index
    %60 = vector.load %arg12[%c32_65, %c256_66] : memref<72x512xf32, #tpu.memory_space<vmem>>, vector<8x8xf32>
    tpu.vector_store %arg12[%c32_65, %c256_66], %59 {strides = array<i32>} : memref<72x512xf32, #tpu.memory_space<vmem>>, vector<8x8xf32>,
    %c0_67 = arith.constant 0 : index
    %c769 = arith.constant 769 : index
    %61 = vector.load %arg11[%c0_67, %c769] : memref<8x1024xf32, #tpu.memory_space<vmem>>, vector<8x8xf32>
    %c32_68 = arith.constant 32 : index
    %c384_69 = arith.constant 384 : index
    %62 = vector.load %arg12[%c32_68, %c384_69] : memref<72x512xf32, #tpu.memory_space<vmem>>, vector<8x8xf32>
    tpu.vector_store %arg12[%c32_68, %c384_69], %61 {strides = array<i32>} : memref<72x512xf32, #tpu.memory_space<vmem>>, vector<8x8xf32>,
    %c0_70 = arith.constant 0 : index
    %c2 = arith.constant 2 : index
    %63 = vector.load %arg11[%c0_70, %c2] : memref<8x1024xf32, #tpu.memory_space<vmem>>, vector<8x8xf32>
    %c40 = arith.constant 40 : index
    %c0_71 = arith.constant 0 : index
    %64 = vector.load %arg12[%c40, %c0_71] : memref<72x512xf32, #tpu.memory_space<vmem>>, vector<8x8xf32>
    tpu.vector_store %arg12[%c40, %c0_71], %63 {strides = array<i32>} : memref<72x512xf32, #tpu.memory_space<vmem>>, vector<8x8xf32>,
    %c0_72 = arith.constant 0 : index
    %c258 = arith.constant 258 : index
    %65 = vector.load %arg11[%c0_72, %c258] : memref<8x1024xf32, #tpu.memory_space<vmem>>, vector<8x8xf32>
    %c40_73 = arith.constant 40 : index
    %c128_74 = arith.constant 128 : index
    %66 = vector.load %arg12[%c40_73, %c128_74] : memref<72x512xf32, #tpu.memory_space<vmem>>, vector<8x8xf32>
    tpu.vector_store %arg12[%c40_73, %c128_74], %65 {strides = array<i32>} : memref<72x512xf32, #tpu.memory_space<vmem>>, vector<8x8xf32>,
    %c0_75 = arith.constant 0 : index
    %c514 = arith.constant 514 : index
    %67 = vector.load %arg11[%c0_75, %c514] : memref<8x1024xf32, #tpu.memory_space<vmem>>, vector<8x8xf32>
    %c40_76 = arith.constant 40 : index
    %c256_77 = arith.constant 256 : index
    %68 = vector.load %arg12[%c40_76, %c256_77] : memref<72x512xf32, #tpu.memory_space<vmem>>, vector<8x8xf32>
    tpu.vector_store %arg12[%c40_76, %c256_77], %67 {strides = array<i32>} : memref<72x512xf32, #tpu.memory_space<vmem>>, vector<8x8xf32>,
    %c0_78 = arith.constant 0 : index
    %c770 = arith.constant 770 : index
    %69 = vector.load %arg11[%c0_78, %c770] : memref<8x1024xf32, #tpu.memory_space<vmem>>, vector<8x8xf32>
    %c40_79 = arith.constant 40 : index
    %c384_80 = arith.constant 384 : index
    %70 = vector.load %arg12[%c40_79, %c384_80] : memref<72x512xf32, #tpu.memory_space<vmem>>, vector<8x8xf32>
    tpu.vector_store %arg12[%c40_79, %c384_80], %69 {strides = array<i32>} : memref<72x512xf32, #tpu.memory_space<vmem>>, vector<8x8xf32>,
    %c0_81 = arith.constant 0 : index
    %c128_82 = arith.constant 128 : index
    %71 = vector.load %arg11[%c0_81, %c128_82] : memref<8x1024xf32, #tpu.memory_space<vmem>>, vector<8x8xf32>
    %c48 = arith.constant 48 : index
    %c0_83 = arith.constant 0 : index
    %72 = vector.load %arg12[%c48, %c0_83] : memref<72x512xf32, #tpu.memory_space<vmem>>, vector<8x8xf32>
    tpu.vector_store %arg12[%c48, %c0_83], %71 {strides = array<i32>} : memref<72x512xf32, #tpu.memory_space<vmem>>, vector<8x8xf32>,
    %c0_84 = arith.constant 0 : index
    %c384_85 = arith.constant 384 : index
    %73 = vector.load %arg11[%c0_84, %c384_85] : memref<8x1024xf32, #tpu.memory_space<vmem>>, vector<8x8xf32>
    %c48_86 = arith.constant 48 : index
    %c128_87 = arith.constant 128 : index
    %74 = vector.load %arg12[%c48_86, %c128_87] : memref<72x512xf32, #tpu.memory_space<vmem>>, vector<8x8xf32>
    tpu.vector_store %arg12[%c48_86, %c128_87], %73 {strides = array<i32>} : memref<72x512xf32, #tpu.memory_space<vmem>>, vector<8x8xf32>,
    %c0_88 = arith.constant 0 : index
    %c640_89 = arith.constant 640 : index
    %75 = vector.load %arg11[%c0_88, %c640_89] : memref<8x1024xf32, #tpu.memory_space<vmem>>, vector<8x8xf32>
    %c48_90 = arith.constant 48 : index
    %c256_91 = arith.constant 256 : index
    %76 = vector.load %arg12[%c48_90, %c256_91] : memref<72x512xf32, #tpu.memory_space<vmem>>, vector<8x8xf32>
    tpu.vector_store %arg12[%c48_90, %c256_91], %75 {strides = array<i32>} : memref<72x512xf32, #tpu.memory_space<vmem>>, vector<8x8xf32>,
    %c0_92 = arith.constant 0 : index
    %c896 = arith.constant 896 : index
    %77 = vector.load %arg11[%c0_92, %c896] : memref<8x1024xf32, #tpu.memory_space<vmem>>, vector<8x8xf32>
    %c48_93 = arith.constant 48 : index
    %c384_94 = arith.constant 384 : index
    %78 = vector.load %arg12[%c48_93, %c384_94] : memref<72x512xf32, #tpu.memory_space<vmem>>, vector<8x8xf32>
    tpu.vector_store %arg12[%c48_93, %c384_94], %77 {strides = array<i32>} : memref<72x512xf32, #tpu.memory_space<vmem>>, vector<8x8xf32>,
    %c0_95 = arith.constant 0 : index
    %c129_96 = arith.constant 129 : index
    %79 = vector.load %arg11[%c0_95, %c129_96] : memref<8x1024xf32, #tpu.memory_space<vmem>>, vector<8x8xf32>
    %c56 = arith.constant 56 : index
    %c0_97 = arith.constant 0 : index
    %80 = vector.load %arg12[%c56, %c0_97] : memref<72x512xf32, #tpu.memory_space<vmem>>, vector<8x8xf32>
    tpu.vector_store %arg12[%c56, %c0_97], %79 {strides = array<i32>} : memref<72x512xf32, #tpu.memory_space<vmem>>, vector<8x8xf32>,
    %c0_98 = arith.constant 0 : index
    %c385_99 = arith.constant 385 : index
    %81 = vector.load %arg11[%c0_98, %c385_99] : memref<8x1024xf32, #tpu.memory_space<vmem>>, vector<8x8xf32>
    %c56_100 = arith.constant 56 : index
    %c128_101 = arith.constant 128 : index
    %82 = vector.load %arg12[%c56_100, %c128_101] : memref<72x512xf32, #tpu.memory_space<vmem>>, vector<8x8xf32>
    tpu.vector_store %arg12[%c56_100, %c128_101], %81 {strides = array<i32>} : memref<72x512xf32, #tpu.memory_space<vmem>>, vector<8x8xf32>,
    %c0_102 = arith.constant 0 : index
    %c641_103 = arith.constant 641 : index
    %83 = vector.load %arg11[%c0_102, %c641_103] : memref<8x1024xf32, #tpu.memory_space<vmem>>, vector<8x8xf32>
    %c56_104 = arith.constant 56 : index
    %c256_105 = arith.constant 256 : index
    %84 = vector.load %arg12[%c56_104, %c256_105] : memref<72x512xf32, #tpu.memory_space<vmem>>, vector<8x8xf32>
    tpu.vector_store %arg12[%c56_104, %c256_105], %83 {strides = array<i32>} : memref<72x512xf32, #tpu.memory_space<vmem>>, vector<8x8xf32>,
    %c0_106 = arith.constant 0 : index
    %c897 = arith.constant 897 : index
    %85 = vector.load %arg11[%c0_106, %c897] : memref<8x1024xf32, #tpu.memory_space<vmem>>, vector<8x8xf32>
    %c56_107 = arith.constant 56 : index
    %c384_108 = arith.constant 384 : index
    %86 = vector.load %arg12[%c56_107, %c384_108] : memref<72x512xf32, #tpu.memory_space<vmem>>, vector<8x8xf32>
    tpu.vector_store %arg12[%c56_107, %c384_108], %85 {strides = array<i32>} : memref<72x512xf32, #tpu.memory_space<vmem>>, vector<8x8xf32>,
    %c0_109 = arith.constant 0 : index
    %c130_110 = arith.constant 130 : index
    %87 = vector.load %arg11[%c0_109, %c130_110] : memref<8x1024xf32, #tpu.memory_space<vmem>>, vector<8x8xf32>
    %c64 = arith.constant 64 : index
    %c0_111 = arith.constant 0 : index
    %88 = vector.load %arg12[%c64, %c0_111] : memref<72x512xf32, #tpu.memory_space<vmem>>, vector<8x8xf32>
    tpu.vector_store %arg12[%c64, %c0_111], %87 {strides = array<i32>} : memref<72x512xf32, #tpu.memory_space<vmem>>, vector<8x8xf32>,
    %c0_112 = arith.constant 0 : index
    %c386_113 = arith.constant 386 : index
    %89 = vector.load %arg11[%c0_112, %c386_113] : memref<8x1024xf32, #tpu.memory_space<vmem>>, vector<8x8xf32>
    %c64_114 = arith.constant 64 : index
    %c128_115 = arith.constant 128 : index
    %90 = vector.load %arg12[%c64_114, %c128_115] : memref<72x512xf32, #tpu.memory_space<vmem>>, vector<8x8xf32>
    tpu.vector_store %arg12[%c64_114, %c128_115], %89 {strides = array<i32>} : memref<72x512xf32, #tpu.memory_space<vmem>>, vector<8x8xf32>,
    %c0_116 = arith.constant 0 : index
    %c642_117 = arith.constant 642 : index
    %91 = vector.load %arg11[%c0_116, %c642_117] : memref<8x1024xf32, #tpu.memory_space<vmem>>, vector<8x8xf32>
    %c64_118 = arith.constant 64 : index
    %c256_119 = arith.constant 256 : index
    %92 = vector.load %arg12[%c64_118, %c256_119] : memref<72x512xf32, #tpu.memory_space<vmem>>, vector<8x8xf32>
    tpu.vector_store %arg12[%c64_118, %c256_119], %91 {strides = array<i32>} : memref<72x512xf32, #tpu.memory_space<vmem>>, vector<8x8xf32>,
    %c0_120 = arith.constant 0 : index
    %c898 = arith.constant 898 : index
    %93 = vector.load %arg11[%c0_120, %c898] : memref<8x1024xf32, #tpu.memory_space<vmem>>, vector<8x8xf32>
    %c64_121 = arith.constant 64 : index
    %c384_122 = arith.constant 384 : index
    %94 = vector.load %arg12[%c64_121, %c384_122] : memref<72x512xf32, #tpu.memory_space<vmem>>, vector<8x8xf32>
    tpu.vector_store %arg12[%c64_121, %c384_122], %93 {strides = array<i32>} : memref<72x512xf32, #tpu.memory_space<vmem>>, vector<8x8xf32>,
    %c0_123 = arith.constant 0 : index
    %c0_124 = arith.constant 0 : index
    %95 = vector.load %arg8[%c0_123, %c0_124] : memref<8x72xf32, #tpu.memory_space<vmem>>, vector<8x72xf32>
    %c0_125 = arith.constant 0 : index
    %c0_126 = arith.constant 0 : index
    %96 = vector.load %arg12[%c0_125, %c0_126] : memref<72x512xf32, #tpu.memory_space<vmem>>, vector<72x512xf32>
    %cst_127 = arith.constant dense<0.000000e+00> : vector<8x512xf32>
    %97 = tpu.matmul %95, %96, %cst_127 {dimension_numbers = #tpu.dot_dimension_numbers<[1], [0], [0], [1], [0, 0, 1, 1], [], []>} : vector<8x72xf32>, vector<72x512xf32>, vector<8x512xf32> -> vector<8x512xf32>
    %c0_128 = arith.constant 0 : index
    %c0_129 = arith.constant 0 : index
    %98 = vector.load %arg9[%c0_128, %c0_129] : memref<8x1xf32, #tpu.memory_space<vmem>>, vector<8x1xf32>
    %99 = vector.broadcast %98 : vector<8x1xf32> to vector<8x512xf32>
    %100 = arith.addf %97, %99 : vector<8x512xf32>
    %cst_130 = arith.constant 0.000000e+00 : f32
    %cst_131 = arith.constant 2.000000e+01 : f32
    %101 = vector.broadcast %cst_130 : f32 to vector<8x512xf32>
    %102 = arith.maximumf %101, %100 : vector<8x512xf32>
    %103 = vector.broadcast %cst_131 : f32 to vector<8x512xf32>
    %104 = arith.minimumf %103, %102 : vector<8x512xf32>
    %c0_132 = arith.constant 0 : index
    %c0_133 = arith.constant 0 : index
    %105 = vector.load %arg4[%c0_132, %c0_133] : memref<1x512xi32, #tpu.memory_space<vmem>>, vector<1x512xi32>
    %106 = vector.broadcast %3 : i32 to vector<1x512xi32>
    %107 = arith.cmpi sge, %105, %106 : vector<1x512xi32>
    %cst_134 = arith.constant 0.000000e+00 : f32
    %108 = vector.shape_cast %107 : vector<1x512xi1> to vector<1x512xi1>
    %109 = vector.broadcast %108 : vector<1x512xi1> to vector<8x512xi1>
    %110 = vector.broadcast %cst_134 : f32 to vector<8x512xf32>
    %111 = arith.select %109, %110, %104 : vector<8x512xi1>, vector<8x512xf32>
    %c0_135 = arith.constant 0 : index
    %c0_136 = arith.constant 0 : index
    %c0_137 = arith.constant 0 : index
    %112 = vector.load %arg10[%c0_135, %c0_136, %c0_137] : memref<1x8x512xf32, #tpu.memory_space<vmem>>, vector<1x8x512xf32>
    %113 = vector.shape_cast %112 : vector<1x8x512xf32> to vector<8x512xf32>
    %114 = vector.shape_cast %111 : vector<8x512xf32> to vector<1x8x512xf32>
    tpu.vector_store %arg10[%c0_135, %c0_136, %c0_137], %114 {strides = array<i32>} : memref<1x8x512xf32, #tpu.memory_space<vmem>>, vector<1x8x512xf32>,
    return
  }
  func.func @transform_0(%arg0: i32, %arg1: memref<2xi32, #tpu.memory_space<smem>>, %arg2: memref<2xi32, #tpu.memory_space<smem>>) -> (i32, i32) {
    %c0_i32 = arith.constant 0 : i32
    %c0_i32_0 = arith.constant 0 : i32
    %c0_i32_1 = arith.constant 0 : i32
    return %c0_i32, %c0_i32_0 : i32, i32
  }
  func.func @transform_1(%arg0: i32, %arg1: memref<2xi32, #tpu.memory_space<smem>>, %arg2: memref<2xi32, #tpu.memory_space<smem>>) -> (i32, i32) {
    %c0_i32 = arith.constant 0 : i32
    %c0_i32_0 = arith.constant 0 : i32
    %c0_i32_1 = arith.constant 0 : i32
    return %c0_i32, %c0_i32_0 : i32, i32
  }
  func.func @transform_2(%arg0: i32, %arg1: memref<2xi32, #tpu.memory_space<smem>>, %arg2: memref<2xi32, #tpu.memory_space<smem>>) -> (i32, i32, i32) {
    %c0_i32 = arith.constant 0 : i32
    %c0_i32_0 = arith.constant 0 : i32
    %c0_i32_1 = arith.constant 0 : i32
    return %arg0, %c0_i32, %c0_i32_0 : i32, i32, i32
  }
  func.func @transform_3(%arg0: i32, %arg1: memref<2xi32, #tpu.memory_space<smem>>, %arg2: memref<2xi32, #tpu.memory_space<smem>>) -> (i32, i32) {
    %c0_i32 = arith.constant 0 : i32
    %c0_i32_0 = arith.constant 0 : i32
    %c0_i32_1 = arith.constant 0 : i32
    return %c0_i32, %c0_i32_0 : i32, i32
  }
  func.func @transform_4(%arg0: i32, %arg1: memref<2xi32, #tpu.memory_space<smem>>, %arg2: memref<2xi32, #tpu.memory_space<smem>>) -> (i32, i32) {
    %c0_i32 = arith.constant 0 : i32
    %c0_i32_0 = arith.constant 0 : i32
    %c0_i32_1 = arith.constant 0 : i32
    return %c0_i32, %c0_i32_0 : i32, i32
  }
  func.func @transform_5(%arg0: i32, %arg1: memref<2xi32, #tpu.memory_space<smem>>, %arg2: memref<2xi32, #tpu.memory_space<smem>>) -> (i32, i32) {
    %c0_i32 = arith.constant 0 : i32
    %c0_i32_0 = arith.constant 0 : i32
    %c0_i32_1 = arith.constant 0 : i32
    return %c0_i32, %c0_i32_0 : i32, i32
  }
  func.func @transform_6(%arg0: i32, %arg1: memref<2xi32, #tpu.memory_space<smem>>, %arg2: memref<2xi32, #tpu.memory_space<smem>>) -> (i32, i32) {
    %c0_i32 = arith.constant 0 : i32
    %c0_i32_0 = arith.constant 0 : i32
    %c0_i32_1 = arith.constant 0 : i32
    return %c0_i32, %c0_i32_0 : i32, i32
  }
  func.func @transform_7(%arg0: i32, %arg1: memref<2xi32, #tpu.memory_space<smem>>, %arg2: memref<2xi32, #tpu.memory_space<smem>>) -> (i32, i32, i32) {
    %c0_i32 = arith.constant 0 : i32
    %c0_i32_0 = arith.constant 0 : i32
    %c0_i32_1 = arith.constant 0 : i32
    return %arg0, %c0_i32, %c0_i32_0 : i32, i32, i32
  }
}

</mosaic_0001>

<llo_original>
// kernel: tpu_custom_call.1
$region0: #{tpu_custom_call.1}
  #allocation0 [shape = 'u32[]', space=smem, size = 0x4, offset = 0x4, fixed_abs, tag = 'smem constant byte address 0x4 - core index']
  #allocation1 [shape = 'u32[144,128]{1,0:T(1,128)}', space=vmem, size = 0x12000, scoped, tag = 'internal scratch']
  #allocation2 [shape = 'f32[8,1024]{1,0:T(8,128)}', space=vmem, size = 0x8000, scoped, tag = 'scratch operand']
  #allocation3 [shape = 'f32[72,512]{1,0:T(8,128)}', space=vmem, size = 0x24000, scoped, tag = 'scratch operand']
  #allocation4 [shape = 's32[1]{0}', space=sflag, size = 0x4, scoped, tag = 'scoped memory for tpu_custom_call.1']
  #allocation5 [shape = 'u8[512]{0}', space=smem, size = 0x200, scoped, tag = 'prefetched SMEM operand 0']
  #allocation6 [shape = 'u8[512]{0}', space=smem, size = 0x200, scoped, tag = 'prefetched SMEM operand 1']
  %s0 = inlined_call_operand.vmem [shape: s32[2], index: 0, kind: input, shape index: {}]
  %s1 = inlined_call_operand.vmem [shape: s32[2], index: 1, kind: input, shape index: {}]
  %s2 = inlined_call_operand.vmem [shape: s32[1,1024], index: 2, kind: input, shape index: {}]
  %s3 = inlined_call_operand.vmem [shape: s32[1,512], index: 3, kind: input, shape index: {}]
  %s4 = inlined_call_operand.vmem [shape: f32[2,9,1024], index: 4, kind: input, shape index: {}]
  %s5 = inlined_call_operand.vmem [shape: f32[8,9], index: 5, kind: input, shape index: {}]
  %s6 = inlined_call_operand.vmem [shape: f32[8,1], index: 6, kind: input, shape index: {}]
  %s7 = inlined_call_operand.vmem [shape: f32[8,72], index: 7, kind: input, shape index: {}]
  %s8 = inlined_call_operand.vmem [shape: f32[8,1], index: 8, kind: input, shape index: {}]
  %s9 = inlined_call_operand.hbm [shape: f32[2,8,512], index: 9, kind: output, shape index: {}]
  %s10 = sld [smem:[#allocation0]]
  $region61: #{tpu_custom_call.1} parent=0
    _
  %s12 = ssub.s32 1, %s10
  %s13 = scalar_select 0, %s12, %s10
  %s14 = sshll.u32 %s0, 4
  %s15 = int_to_ptr.vmem [resolvable:$true] %s14
  %17 = dma.vmem_to_smem %s15, 16, [#allocation5], [#allocation4]
  %s18 = sshll.u32 %s1, 4
  %s19 = int_to_ptr.vmem [resolvable:$true] %s18
  %21 = dma.vmem_to_smem %s19, 16, [#allocation6], [#allocation4]
  %22 = dma.done [#allocation4], 32
  %23 = sfence
  $region1: #{tpu_custom_call.1} parent=0
    #allocation7 [shape = 'u8[32768]{0}', space=vmem, size = 0x8000, scoped, tag = 'output window, operand 0']
    #allocation8 [shape = 's32[2]{0}', space=sflag, size = 0x8, scoped, tag = 'scoped memory for tpu_custom_call.1']
    %24 = vsyncpa [#allocation8], 0
    %s25 = scalar_lea.sflag [#allocation8], 1
    %26 = vsyncpa %s25, 0
    loop: start=0, step=1, limit=4
    $region2: #{tpu_custom_call.1} parent=1 // loop_pre_header
      _
    $region3: #{tpu_custom_call.1} parent=1 // loop_header
      %s28 = sphi 0, %s32
      %p29 = scmp.ge.s32.totalorder %s28, 4
      %s36 = sphi 0, %s36
      %s38 = sphi 0, %s36
      %s39 = sphi 0, %s38
      %s53 = sphi 0, %s39
      %s57 = sphi 0, %s57
      %s59 = sphi 0, %s57
      %s60 = sphi 0, %s59
      %s74 = sphi 0, %s60
      %s80 = sphi 0, %s82
      %s83 = sphi 0, %s80
      %s84 = sphi 0, %s83
      %s100 = sphi 0, %s84
      %s104 = sphi 0, %s104
      %s106 = sphi 0, %s104
      %s107 = sphi 0, %s106
      %s121 = sphi 0, %s107
      %s125 = sphi 0, %s125
      %s127 = sphi 0, %s125
      %s128 = sphi 0, %s127
      %s142 = sphi 0, %s128
      %s146 = sphi 0, %s146
      %s148 = sphi 0, %s146
      %s149 = sphi 0, %s148
      %s163 = sphi 0, %s149
      %s167 = sphi 0, %s167
      %s169 = sphi 0, %s167
      %s170 = sphi 0, %s169
      %s184 = sphi 0, %s170
      %s190 = sphi 0, %s192
      %s193 = sphi 0, %s190
      %s194 = sphi 0, %s193
      %s210 = sphi 0, %s194
    $region4: #{tpu_custom_call.1} parent=1 // loop_header_branch
      %31 = sbr.rel (%p29) target = $region8
    $region5: #{tpu_custom_call.1} parent=1 // loop_body
      %s33 = ssub.s32 %s28, 1
      %s34 = ssub.s32 %s28, 2
      %s35 = sadd.s32 %s28, 1
      %s37 = sadd.s32 %s36, 1
      %p40 = scmp.eq.s32.totalorder %s28, 1
      %p41 = scmp.ne.s32.totalorder %s36, %s38
      %p42 = scmp.eq.s32.totalorder %s28, 0
      %p43 = por %p41, %p42
      %p44 = scmp.ne.s32.totalorder %s36, %s38
      %p45 = scmp.eq.s32.totalorder %s33, 1
      %p46 = por %p44, %p45
      %p47 = scmp.ne.s32.totalorder %s38, %s39
      %p48 = scmp.eq.s32.totalorder %s33, 0
      %p49 = por %p47, %p48
      %p50 = scmp.ne.s32.totalorder %s38, %s39
      %p51 = scmp.eq.s32.totalorder %s34, 1
      %p52 = por %p50, %p51
      %p54 = scmp.ne.s32.totalorder %s39, %s53
      %p55 = scmp.eq.s32.totalorder %s34, 0
      %p56 = por %p54, %p55
      %s58 = sadd.s32 %s57, 1
      %p61 = scmp.eq.s32.totalorder %s28, 1
      %p62 = scmp.ne.s32.totalorder %s57, %s59
      %p63 = scmp.eq.s32.totalorder %s28, 0
      %p64 = por %p62, %p63
      %p65 = scmp.ne.s32.totalorder %s57, %s59
      %p66 = scmp.eq.s32.totalorder %s33, 1
      %p67 = por %p65, %p66
      %p68 = scmp.ne.s32.totalorder %s59, %s60
      %p69 = scmp.eq.s32.totalorder %s33, 0
      %p70 = por %p68, %p69
      %p71 = scmp.ne.s32.totalorder %s59, %s60
      %p72 = scmp.eq.s32.totalorder %s34, 1
      %p73 = por %p71, %p72
      %p75 = scmp.ne.s32.totalorder %s60, %s74
      %p76 = scmp.eq.s32.totalorder %s34, 0
      %p77 = por %p75, %p76
      %s78 = ssub.s32 %s28, %s35
      %p79 = scmp.eq.s32.totalorder %s78, 0
      %s81 = sadd.s32 %s80, 1
      %s82 = scalar_select %p79, %s80, %s81
      %p85 = pneg %p79
      %p86 = scmp.eq.s32.totalorder %s28, 1
      %p87 = por %p85, %p86
      %p88 = scmp.ne.s32.totalorder %s80, %s83
      %p89 = scmp.eq.s32.totalorder %s28, 0
      %p90 = por %p88, %p89
      %p91 = scmp.ne.s32.totalorder %s80, %s83
      %p92 = scmp.eq.s32.totalorder %s33, 1
      %p93 = por %p91, %p92
      %p94 = scmp.ne.s32.totalorder %s83, %s84
      %p95 = scmp.eq.s32.totalorder %s33, 0
      %p96 = por %p94, %p95
      %p97 = scmp.ne.s32.totalorder %s83, %s84
      %p98 = scmp.eq.s32.totalorder %s34, 1
      %p99 = por %p97, %p98
      %p101 = scmp.ne.s32.totalorder %s84, %s100
      %p102 = scmp.eq.s32.totalorder %s34, 0
      %p103 = por %p101, %p102
      %s105 = sadd.s32 %s104, 1
      %p108 = scmp.eq.s32.totalorder %s28, 1
      %p109 = scmp.ne.s32.totalorder %s104, %s106
      %p110 = scmp.eq.s32.totalorder %s28, 0
      %p111 = por %p109, %p110
      %p112 = scmp.ne.s32.totalorder %s104, %s106
      %p113 = scmp.eq.s32.totalorder %s33, 1
      %p114 = por %p112, %p113
      %p115 = scmp.ne.s32.totalorder %s106, %s107
      %p116 = scmp.eq.s32.totalorder %s33, 0
      %p117 = por %p115, %p116
      %p118 = scmp.ne.s32.totalorder %s106, %s107
      %p119 = scmp.eq.s32.totalorder %s34, 1
      %p120 = por %p118, %p119
      %p122 = scmp.ne.s32.totalorder %s107, %s121
      %p123 = scmp.eq.s32.totalorder %s34, 0
      %p124 = por %p122, %p123
      %s126 = sadd.s32 %s125, 1
      %p129 = scmp.eq.s32.totalorder %s28, 1
      %p130 = scmp.ne.s32.totalorder %s125, %s127
      %p131 = scmp.eq.s32.totalorder %s28, 0
      %p132 = por %p130, %p131
      %p133 = scmp.ne.s32.totalorder %s125, %s127
      %p134 = scmp.eq.s32.totalorder %s33, 1
      %p135 = por %p133, %p134
      %p136 = scmp.ne.s32.totalorder %s127, %s128
      %p137 = scmp.eq.s32.totalorder %s33, 0
      %p138 = por %p136, %p137
      %p139 = scmp.ne.s32.totalorder %s127, %s128
      %p140 = scmp.eq.s32.totalorder %s34, 1
      %p141 = por %p139, %p140
      %p143 = scmp.ne.s32.totalorder %s128, %s142
      %p144 = scmp.eq.s32.totalorder %s34, 0
      %p145 = por %p143, %p144
      %s147 = sadd.s32 %s146, 1
      %p150 = scmp.eq.s32.totalorder %s28, 1
      %p151 = scmp.ne.s32.totalorder %s146, %s148
      %p152 = scmp.eq.s32.totalorder %s28, 0
      %p153 = por %p151, %p152
      %p154 = scmp.ne.s32.totalorder %s146, %s148
      %p155 = scmp.eq.s32.totalorder %s33, 1
      %p156 = por %p154, %p155
      %p157 = scmp.ne.s32.totalorder %s148, %s149
      %p158 = scmp.eq.s32.totalorder %s33, 0
      %p159 = por %p157, %p158
      %p160 = scmp.ne.s32.totalorder %s148, %s149
      %p161 = scmp.eq.s32.totalorder %s34, 1
      %p162 = por %p160, %p161
      %p164 = scmp.ne.s32.totalorder %s149, %s163
      %p165 = scmp.eq.s32.totalorder %s34, 0
      %p166 = por %p164, %p165
      %s168 = sadd.s32 %s167, 1
      %p171 = scmp.eq.s32.totalorder %s28, 1
      %p172 = scmp.ne.s32.totalorder %s167, %s169
      %p173 = scmp.eq.s32.totalorder %s28, 0
      %p174 = por %p172, %p173
      %p175 = scmp.ne.s32.totalorder %s167, %s169
      %p176 = scmp.eq.s32.totalorder %s33, 1
      %p177 = por %p175, %p176
      %p178 = scmp.ne.s32.totalorder %s169, %s170
      %p179 = scmp.eq.s32.totalorder %s33, 0
      %p180 = por %p178, %p179
      %p181 = scmp.ne.s32.totalorder %s169, %s170
      %p182 = scmp.eq.s32.totalorder %s34, 1
      %p183 = por %p181, %p182
      %p185 = scmp.ne.s32.totalorder %s170, %s184
      %p186 = scmp.eq.s32.totalorder %s34, 0
      %p187 = por %p185, %p186
      %s188 = ssub.s32 %s28, %s35
      %p189 = scmp.eq.s32.totalorder %s188, 0
      %s191 = sadd.s32 %s190, 1
      %s192 = scalar_select %p189, %s190, %s191
      %p195 = pneg %p189
      %p196 = scmp.eq.s32.totalorder %s28, 1
      %p197 = por %p195, %p196
      %p198 = scmp.ne.s32.totalorder %s190, %s193
      %p199 = scmp.eq.s32.totalorder %s28, 0
      %p200 = por %p198, %p199
      %p201 = scmp.ne.s32.totalorder %s190, %s193
      %p202 = scmp.eq.s32.totalorder %s33, 1
      %p203 = por %p201, %p202
      %p204 = scmp.ne.s32.totalorder %s193, %s194
      %p205 = scmp.eq.s32.totalorder %s33, 0
      %p206 = por %p204, %p205
      %p207 = scmp.ne.s32.totalorder %s193, %s194
      %p208 = scmp.eq.s32.totalorder %s34, 1
      %p209 = por %p207, %p208
      %p211 = scmp.ne.s32.totalorder %s194, %s210
      %p212 = scmp.eq.s32.totalorder %s34, 0
      %p213 = por %p211, %p212
      %p214 = scmp.le.s32.totalorder 1, %s28
      %p215 = scmp.lt.s32.totalorder %s28, 3
      %p216 = pnand %p214, %p215
      %p217 = pneg %p216
      // Predicated region
      $region9: #{tpu_custom_call.1} parent=5 // pred_check
        _
      $region10: #{tpu_custom_call.1} parent=5 // pred_check_branch
        %219 = sbr.rel (%p216) target = $region12
      $region11: #{tpu_custom_call.1} parent=5 // pred_region
        %s220 = ssub.s32 %s28, 1
        // Predicated region
        $region13: #{tpu_custom_call.1} parent=11 // pred_check
          %p221 = pneg %p49
        $region14: #{tpu_custom_call.1} parent=11 // pred_check_branch
          %223 = sbr.rel (%p221) target = $region16
        $region15: #{tpu_custom_call.1} parent=11 // pred_region
          _
        $region16: #{tpu_custom_call.1} parent=11 // pred_fallthru
          _
        // Predicated region
        $region17: #{tpu_custom_call.1} parent=11 // pred_check
          %p224 = pneg %p70
        $region18: #{tpu_custom_call.1} parent=11 // pred_check_branch
          %226 = sbr.rel (%p224) target = $region20
        $region19: #{tpu_custom_call.1} parent=11 // pred_region
          _
        $region20: #{tpu_custom_call.1} parent=11 // pred_fallthru
          _
        // Predicated region
        $region21: #{tpu_custom_call.1} parent=11 // pred_check
          %p227 = pneg %p117
        $region22: #{tpu_custom_call.1} parent=11 // pred_check_branch
          %229 = sbr.rel (%p227) target = $region24
        $region23: #{tpu_custom_call.1} parent=11 // pred_region
          _
        $region24: #{tpu_custom_call.1} parent=11 // pred_fallthru
          _
        // Predicated region
        $region25: #{tpu_custom_call.1} parent=11 // pred_check
          %p230 = pneg %p138
        $region26: #{tpu_custom_call.1} parent=11 // pred_check_branch
          %232 = sbr.rel (%p230) target = $region28
        $region27: #{tpu_custom_call.1} parent=11 // pred_region
          _
        $region28: #{tpu_custom_call.1} parent=11 // pred_fallthru
          _
        // Predicated region
        $region29: #{tpu_custom_call.1} parent=11 // pred_check
          %p233 = pneg %p159
        $region30: #{tpu_custom_call.1} parent=11 // pred_check_branch
          %235 = sbr.rel (%p233) target = $region32
        $region31: #{tpu_custom_call.1} parent=11 // pred_region
          _
        $region32: #{tpu_custom_call.1} parent=11 // pred_fallthru
          _
        // Predicated region
        $region33: #{tpu_custom_call.1} parent=11 // pred_check
          %p236 = pneg %p180
        $region34: #{tpu_custom_call.1} parent=11 // pred_check_branch
          %238 = sbr.rel (%p236) target = $region36
        $region35: #{tpu_custom_call.1} parent=11 // pred_region
          _
        $region36: #{tpu_custom_call.1} parent=11 // pred_fallthru
          _
      $region12: #{tpu_custom_call.1} parent=5 // pred_fallthru
        _
      %p239 = scmp.lt.s32.totalorder %s28, 2
      // Predicated region
      $region37: #{tpu_custom_call.1} parent=5 // pred_check
        %p240 = pneg %p239
      $region38: #{tpu_custom_call.1} parent=5 // pred_check_branch
        %242 = sbr.rel (%p240) target = $region40
      $region39: #{tpu_custom_call.1} parent=5 // pred_region
        // Predicated region
        $region41: #{tpu_custom_call.1} parent=39 // pred_check
          %p243 = pneg %p90
        $region42: #{tpu_custom_call.1} parent=39 // pred_check_branch
          %245 = sbr.rel (%p243) target = $region44
        $region43: #{tpu_custom_call.1} parent=39 // pred_region
          %p246 = scmp.lt.s32.totalorder %s28, 1
          %s247 = scalar_select %p246, %s28, 1
          %s248 = smul.addr %s247, 16
          %s249 = smul.addr %s248, 8
          %s250 = scalar_lea.vmem %s4, %s249
        $region44: #{tpu_custom_call.1} parent=39 // pred_fallthru
          _
      $region40: #{tpu_custom_call.1} parent=5 // pred_fallthru
        _
      %p251 = scmp.le.s32.totalorder 1, %s28
      %p252 = scmp.lt.s32.totalorder %s28, 3
      %p253 = pnand %p251, %p252
      %p254 = pneg %p253
      // Predicated region
      $region45: #{tpu_custom_call.1} parent=5 // pred_check
        _
      $region46: #{tpu_custom_call.1} parent=5 // pred_check_branch
        %256 = sbr.rel (%p253) target = $region48
      $region47: #{tpu_custom_call.1} parent=5 // pred_region
        %s257 = ssub.s32 %s28, 1
        %p258 = pneg %p49
        %p259 = pneg %p46
        %p260 = pneg %p70
        %p261 = pneg %p67
        %p262 = scmp.lt.s32.totalorder %s33, 1
        %s263 = scalar_select %p262, %s33, 1
        %s264 = smul.addr %s263, 16
        %s265 = smul.addr %s264, 8
        %s266 = scalar_lea.vmem %s4, %s265
        %p267 = pneg %p96
        %p268 = pneg %p93
        %p269 = pneg %p117
        %p270 = pneg %p114
        %p271 = pneg %p138
        %p272 = pneg %p135
        %p273 = pneg %p159
        %p274 = pneg %p156
        %p275 = pneg %p180
        %p276 = pneg %p177
        %p277 = pneg %p206
        %p278 = pneg %p203
        %s279 = sand.u32 %s193, 1
        %s280 = scalar_lea.sflag [#allocation8], %s279
        %s281 = sand.u32 %s193, 1
        %s282 = smul.addr %s281, 32
        %s283 = scalar_lea.vmem [#allocation7], %s282
        %p284 = scmp.lt.s32.totalorder %s33, 1
        %s285 = scalar_select %p284, %s33, 1
        %s286 = smul.addr %s285, 16
        %s287 = smul.addr %s286, 8
        %s288 = scalar_lea.vmem %s4, %s287
        %s289 = sld [smem:[#allocation5 + %s33]]
        %s290 = sld [smem:[#allocation6 + %s33]]
        %v291 = vld [vmem:[%s5] sm:$0xff]
        %v292 = vld [vmem:[%s288] sm:$0xff]
        %v293 = vld [vmem:[%s288 + $0x8] sm:$0xff]
        %v294 = vld [vmem:[%s288 + $0x10] sm:$0xff]
        %v295 = vld [vmem:[%s288 + $0x18] sm:$0xff]
        %v296 = vld [vmem:[%s288 + $0x20] sm:$0xff]
        %v297 = vld [vmem:[%s288 + $0x28] sm:$0xff]
        %v298 = vld [vmem:[%s288 + $0x30] sm:$0xff]
        %v299 = vld [vmem:[%s288 + $0x38] sm:$0xff]
        %v300 = vld [vmem:[%s288 + $0x40] sm:$0x1]
        %v301 = vld [vmem:[%s288 + $0x48] sm:$0x1]
        %v302 = vld [vmem:[%s288 + $0x50] sm:$0x1]
        %v303 = vld [vmem:[%s288 + $0x58] sm:$0x1]
        %v304 = vld [vmem:[%s288 + $0x60] sm:$0x1]
        %v305 = vld [vmem:[%s288 + $0x68] sm:$0x1]
        %v306 = vld [vmem:[%s288 + $0x70] sm:$0x1]
        %v307 = vld [vmem:[%s288 + $0x78] sm:$0x1]
        %v308 = vld [vmem:[%s6] sm:$0xff]
        %310 = vset.pattern.permute.xlu0 0
        %311 = vperm.xlu0 %310, %v308
        %v312 = vpop.permute.xlu0 %311
        %vm314 = vcmask 72704
        %v316 = vsel %vm314, %v291, 0
        %vm318 = vcmask 1040384
        %v320 = vsel %vm318, %v300, 0
        %v323 = vsel %vm318, %v301, 0
        %v326 = vsel %vm318, %v302, 0
        %v329 = vsel %vm318, %v303, 0
        %v332 = vsel %vm318, %v304, 0
        %v335 = vsel %vm318, %v305, 0
        %v338 = vsel %vm318, %v306, 0
        %v341 = vsel %vm318, %v307, 0
        %343 = vmatprep.subr.mxu0 0.0
        %344 = vmatpush1.msra.mxu0 0.0
        %345 = vmatprep.subr.mxu0 0.0
        %346 = vmatpush1.msra.mxu0 0.0
        %347 = vmatprep.subr.mxu0 0.0
        %348 = vmatpush1.msra.mxu0 0.0
        %349 = vmatprep.subr.mxu0 0.0
        %350 = vmatpush1.msra.mxu0 0.0
        %351 = vmatprep.subr.mxu0 0.0
        %352 = vmatpush1.msra.mxu0 0.0
        %353 = vmatprep.subr.mxu0 0.0
        %354 = vmatpush1.msra.mxu0 0.0
        %355 = vmatprep.subr.mxu0 0.0
        %356 = vmatpush1.msra.mxu0 0.0
        %357 = vmatprep.subr.mxu0 0.0
        %358 = vmatpush1.msra.mxu0 0.0
        %359 = vmatprep.subr.mxu0 0.0
        %360 = vmatpush1.msra.mxu0 0.0
        %361 = vmatprep.subr.mxu0 0.0
        %362 = vmatpush1.msra.mxu0 0.0
        %363 = vmatprep.subr.mxu0 0.0
        %364 = vmatpush1.msra.mxu0 0.0
        %365 = vmatprep.subr.mxu0 0.0
        %366 = vmatpush1.msra.mxu0 0.0
        %367 = vmatprep.subr.mxu0 0.0
        %368 = vmatpush1.msra.mxu0 0.0
        %369 = vmatprep.subr.mxu0 0.0
        %370 = vmatpush1.msra.mxu0 0.0
        %371 = vmatprep.subr.mxu0 %v323
        %372 = vmatpush1.msra.mxu0 %v320
        %373 = vmatprep.subr.mxu0 %v293
        %374 = vmatpush1.msra.mxu0 %v292
        %375 = vmatprep.subr.mxu0 0.0
        %376 = vmatpush2.msra.mxu0 0.0
        %377 = vmatprep.subr.mxu0 0.0
        %378 = vmatpush2.msra.mxu0 0.0
        %379 = vmatprep.subr.mxu0 0.0
        %380 = vmatpush2.msra.mxu0 0.0
        %381 = vmatprep.subr.mxu0 0.0
        %382 = vmatpush2.msra.mxu0 0.0
        %383 = vmatprep.subr.mxu0 0.0
        %384 = vmatpush2.msra.mxu0 0.0
        %385 = vmatprep.subr.mxu0 0.0
        %386 = vmatpush2.msra.mxu0 0.0
        %387 = vmatprep.subr.mxu0 0.0
        %388 = vmatpush2.msra.mxu0 0.0
        %389 = vmatprep.subr.mxu0 0.0
        %390 = vmatpush2.msra.mxu0 0.0
        %391 = vmatprep.subr.mxu0 0.0
        %392 = vmatpush2.msra.mxu0 0.0
        %393 = vmatprep.subr.mxu0 0.0
        %394 = vmatpush2.msra.mxu0 0.0
        %395 = vmatprep.subr.mxu0 0.0
        %396 = vmatpush2.msra.mxu0 0.0
        %397 = vmatprep.subr.mxu0 0.0
        %398 = vmatpush2.msra.mxu0 0.0
        %399 = vmatprep.subr.mxu0 0.0
        %400 = vmatpush2.msra.mxu0 0.0
        %401 = vmatprep.subr.mxu0 0.0
        %402 = vmatpush2.msra.mxu0 0.0
        %403 = vmatprep.subr.mxu0 0.0
        %404 = vmatpush2.msra.mxu0 0.0
        %405 = vmatprep.subr.mxu0 0.0
        %406 = vmatpush2.msra.mxu0 0.0
        %407 = vmatprep.mubr.f32.mxu0 0.0
        %408 = vmatmul.mubr.f32.gmra.mxu0 %v316
        %v409 = vpop.f32.mrf.mxu0
        %v410 = vadd.f32 %v312, %v409
        %v411 = vpop.f32.mrf.mxu0
        %v412 = vadd.f32 %v312, %v411
        %413 = vdwg.mxu0
        %414 = vmatprep.subr.mxu0 0.0
        %415 = vmatpush1.msra.mxu0 0.0
        %416 = vmatprep.subr.mxu0 0.0
        %417 = vmatpush1.msra.mxu0 0.0
        %418 = vmatprep.subr.mxu0 0.0
        %419 = vmatpush1.msra.mxu0 0.0
        %420 = vmatprep.subr.mxu0 0.0
        %421 = vmatpush1.msra.mxu0 0.0
        %422 = vmatprep.subr.mxu0 0.0
        %423 = vmatpush1.msra.mxu0 0.0
        %424 = vmatprep.subr.mxu0 0.0
        %425 = vmatpush1.msra.mxu0 0.0
        %426 = vmatprep.subr.mxu0 0.0
        %427 = vmatpush1.msra.mxu0 0.0
        %428 = vmatprep.subr.mxu0 0.0
        %429 = vmatpush1.msra.mxu0 0.0
        %430 = vmatprep.subr.mxu0 0.0
        %431 = vmatpush1.msra.mxu0 0.0
        %432 = vmatprep.subr.mxu0 0.0
        %433 = vmatpush1.msra.mxu0 0.0
        %434 = vmatprep.subr.mxu0 0.0
        %435 = vmatpush1.msra.mxu0 0.0
        %436 = vmatprep.subr.mxu0 0.0
        %437 = vmatpush1.msra.mxu0 0.0
        %438 = vmatprep.subr.mxu0 0.0
        %439 = vmatpush1.msra.mxu0 0.0
        %440 = vmatprep.subr.mxu0 0.0
        %441 = vmatpush1.msra.mxu0 0.0
        %442 = vmatprep.subr.mxu0 %v329
        %443 = vmatpush1.msra.mxu0 %v326
        %444 = vmatprep.subr.mxu0 %v295
        %445 = vmatpush1.msra.mxu0 %v294
        %446 = vmatprep.subr.mxu0 0.0
        %447 = vmatpush2.msra.mxu0 0.0
        %448 = vmatprep.subr.mxu0 0.0
        %449 = vmatpush2.msra.mxu0 0.0
        %450 = vmatprep.subr.mxu0 0.0
        %451 = vmatpush2.msra.mxu0 0.0
        %452 = vmatprep.subr.mxu0 0.0
        %453 = vmatpush2.msra.mxu0 0.0
        %454 = vmatprep.subr.mxu0 0.0
        %455 = vmatpush2.msra.mxu0 0.0
        %456 = vmatprep.subr.mxu0 0.0
        %457 = vmatpush2.msra.mxu0 0.0
        %458 = vmatprep.subr.mxu0 0.0
        %459 = vmatpush2.msra.mxu0 0.0
        %460 = vmatprep.subr.mxu0 0.0
        %461 = vmatpush2.msra.mxu0 0.0
        %462 = vmatprep.subr.mxu0 0.0
        %463 = vmatpush2.msra.mxu0 0.0
        %464 = vmatprep.subr.mxu0 0.0
        %465 = vmatpush2.msra.mxu0 0.0
        %466 = vmatprep.subr.mxu0 0.0
        %467 = vmatpush2.msra.mxu0 0.0
        %468 = vmatprep.subr.mxu0 0.0
        %469 = vmatpush2.msra.mxu0 0.0
        %470 = vmatprep.subr.mxu0 0.0
        %471 = vmatpush2.msra.mxu0 0.0
        %472 = vmatprep.subr.mxu0 0.0
        %473 = vmatpush2.msra.mxu0 0.0
        %474 = vmatprep.subr.mxu0 0.0
        %475 = vmatpush2.msra.mxu0 0.0
        %476 = vmatprep.subr.mxu0 0.0
        %477 = vmatpush2.msra.mxu0 0.0
        %478 = vmatprep.mubr.f32.mxu0 0.0
        %479 = vmatmul.mubr.f32.gmra.mxu0 %v316
        %v480 = vpop.f32.mrf.mxu0
        %v481 = vadd.f32 %v312, %v480
        %v482 = vpop.f32.mrf.mxu0
        %v483 = vadd.f32 %v312, %v482
        %484 = vdwg.mxu0
        %485 = vmatprep.subr.mxu0 0.0
        %486 = vmatpush1.msra.mxu0 0.0
        %487 = vmatprep.subr.mxu0 0.0
        %488 = vmatpush1.msra.mxu0 0.0
        %489 = vmatprep.subr.mxu0 0.0
        %490 = vmatpush1.msra.mxu0 0.0
        %491 = vmatprep.subr.mxu0 0.0
        %492 = vmatpush1.msra.mxu0 0.0
        %493 = vmatprep.subr.mxu0 0.0
        %494 = vmatpush1.msra.mxu0 0.0
        %495 = vmatprep.subr.mxu0 0.0
        %496 = vmatpush1.msra.mxu0 0.0
        %497 = vmatprep.subr.mxu0 0.0
        %498 = vmatpush1.msra.mxu0 0.0
        %499 = vmatprep.subr.mxu0 0.0
        %500 = vmatpush1.msra.mxu0 0.0
        %501 = vmatprep.subr.mxu0 0.0
        %502 = vmatpush1.msra.mxu0 0.0
        %503 = vmatprep.subr.mxu0 0.0
        %504 = vmatpush1.msra.mxu0 0.0
        %505 = vmatprep.subr.mxu0 0.0
        %506 = vmatpush1.msra.mxu0 0.0
        %507 = vmatprep.subr.mxu0 0.0
        %508 = vmatpush1.msra.mxu0 0.0
        %509 = vmatprep.subr.mxu0 0.0
        %510 = vmatpush1.msra.mxu0 0.0
        %511 = vmatprep.subr.mxu0 0.0
        %512 = vmatpush1.msra.mxu0 0.0
        %513 = vmatprep.subr.mxu0 %v335
        %514 = vmatpush1.msra.mxu0 %v332
        %515 = vmatprep.subr.mxu0 %v297
        %516 = vmatpush1.msra.mxu0 %v296
        %517 = vmatprep.subr.mxu0 0.0
        %518 = vmatpush2.msra.mxu0 0.0
        %519 = vmatprep.subr.mxu0 0.0
        %520 = vmatpush2.msra.mxu0 0.0
        %521 = vmatprep.subr.mxu0 0.0
        %522 = vmatpush2.msra.mxu0 0.0
        %523 = vmatprep.subr.mxu0 0.0
        %524 = vmatpush2.msra.mxu0 0.0
        %525 = vmatprep.subr.mxu0 0.0
        %526 = vmatpush2.msra.mxu0 0.0
        %527 = vmatprep.subr.mxu0 0.0
        %528 = vmatpush2.msra.mxu0 0.0
        %529 = vmatprep.subr.mxu0 0.0
        %530 = vmatpush2.msra.mxu0 0.0
        %531 = vmatprep.subr.mxu0 0.0
        %532 = vmatpush2.msra.mxu0 0.0
        %533 = vmatprep.subr.mxu0 0.0
        %534 = vmatpush2.msra.mxu0 0.0
        %535 = vmatprep.subr.mxu0 0.0
        %536 = vmatpush2.msra.mxu0 0.0
        %537 = vmatprep.subr.mxu0 0.0
        %538 = vmatpush2.msra.mxu0 0.0
        %539 = vmatprep.subr.mxu0 0.0
        %540 = vmatpush2.msra.mxu0 0.0
        %541 = vmatprep.subr.mxu0 0.0
        %542 = vmatpush2.msra.mxu0 0.0
        %543 = vmatprep.subr.mxu0 0.0
        %544 = vmatpush2.msra.mxu0 0.0
        %545 = vmatprep.subr.mxu0 0.0
        %546 = vmatpush2.msra.mxu0 0.0
        %547 = vmatprep.subr.mxu0 0.0
        %548 = vmatpush2.msra.mxu0 0.0
        %549 = vmatprep.mubr.f32.mxu0 0.0
        %550 = vmatmul.mubr.f32.gmra.mxu0 %v316
        %v551 = vpop.f32.mrf.mxu0
        %v552 = vadd.f32 %v312, %v551
        %v553 = vpop.f32.mrf.mxu0
        %v554 = vadd.f32 %v312, %v553
        %555 = vdwg.mxu0
        %556 = vmatprep.subr.mxu0 0.0
        %557 = vmatpush1.msra.mxu0 0.0
        %558 = vmatprep.subr.mxu0 0.0
        %559 = vmatpush1.msra.mxu0 0.0
        %560 = vmatprep.subr.mxu0 0.0
        %561 = vmatpush1.msra.mxu0 0.0
        %562 = vmatprep.subr.mxu0 0.0
        %563 = vmatpush1.msra.mxu0 0.0
        %564 = vmatprep.subr.mxu0 0.0
        %565 = vmatpush1.msra.mxu0 0.0
        %566 = vmatprep.subr.mxu0 0.0
        %567 = vmatpush1.msra.mxu0 0.0
        %568 = vmatprep.subr.mxu0 0.0
        %569 = vmatpush1.msra.mxu0 0.0
        %570 = vmatprep.subr.mxu0 0.0
        %571 = vmatpush1.msra.mxu0 0.0
        %572 = vmatprep.subr.mxu0 0.0
        %573 = vmatpush1.msra.mxu0 0.0
        %574 = vmatprep.subr.mxu0 0.0
        %575 = vmatpush1.msra.mxu0 0.0
        %576 = vmatprep.subr.mxu0 0.0
        %577 = vmatpush1.msra.mxu0 0.0
        %578 = vmatprep.subr.mxu0 0.0
        %579 = vmatpush1.msra.mxu0 0.0
        %580 = vmatprep.subr.mxu0 0.0
        %581 = vmatpush1.msra.mxu0 0.0
        %582 = vmatprep.subr.mxu0 0.0
        %583 = vmatpush1.msra.mxu0 0.0
        %584 = vmatprep.subr.mxu0 %v341
        %585 = vmatpush1.msra.mxu0 %v338
        %586 = vmatprep.subr.mxu0 %v299
        %587 = vmatpush1.msra.mxu0 %v298
        %588 = vmatprep.subr.mxu0 0.0
        %589 = vmatpush2.msra.mxu0 0.0
        %590 = vmatprep.subr.mxu0 0.0
        %591 = vmatpush2.msra.mxu0 0.0
        %592 = vmatprep.subr.mxu0 0.0
        %593 = vmatpush2.msra.mxu0 0.0
        %594 = vmatprep.subr.mxu0 0.0
        %595 = vmatpush2.msra.mxu0 0.0
        %596 = vmatprep.subr.mxu0 0.0
        %597 = vmatpush2.msra.mxu0 0.0
        %598 = vmatprep.subr.mxu0 0.0
        %599 = vmatpush2.msra.mxu0 0.0
        %600 = vmatprep.subr.mxu0 0.0
        %601 = vmatpush2.msra.mxu0 0.0
        %602 = vmatprep.subr.mxu0 0.0
        %603 = vmatpush2.msra.mxu0 0.0
        %604 = vmatprep.subr.mxu0 0.0
        %605 = vmatpush2.msra.mxu0 0.0
        %606 = vmatprep.subr.mxu0 0.0
        %607 = vmatpush2.msra.mxu0 0.0
        %608 = vmatprep.subr.mxu0 0.0
        %609 = vmatpush2.msra.mxu0 0.0
        %610 = vmatprep.subr.mxu0 0.0
        %611 = vmatpush2.msra.mxu0 0.0
        %612 = vmatprep.subr.mxu0 0.0
        %613 = vmatpush2.msra.mxu0 0.0
        %614 = vmatprep.subr.mxu0 0.0
        %615 = vmatpush2.msra.mxu0 0.0
        %616 = vmatprep.subr.mxu0 0.0
        %617 = vmatpush2.msra.mxu0 0.0
        %618 = vmatprep.subr.mxu0 0.0
        %619 = vmatpush2.msra.mxu0 0.0
        %620 = vmatprep.mubr.f32.mxu0 0.0
        %621 = vmatmul.mubr.f32.gmra.mxu0 %v316
        %v622 = vpop.f32.mrf.mxu0
        %v623 = vadd.f32 %v312, %v622
        %v624 = vpop.f32.mrf.mxu0
        %v625 = vadd.f32 %v312, %v624
        %626 = vdwg.mxu0
        %v627 = vmax.f32 %v410, 0.0
        %v628 = vmax.f32 %v412, 0.0
        %v629 = vmax.f32 %v481, 0.0
        %v630 = vmax.f32 %v483, 0.0
        %v631 = vmax.f32 %v552, 0.0
        %v632 = vmax.f32 %v554, 0.0
        %v633 = vmax.f32 %v623, 0.0
        %v634 = vmax.f32 %v625, 0.0
        %v635 = vmin.f32 %v627, 20.0
        %v636 = vmin.f32 %v628, 20.0
        %v637 = vmin.f32 %v629, 20.0
        %v638 = vmin.f32 %v630, 20.0
        %v639 = vmin.f32 %v631, 20.0
        %v640 = vmin.f32 %v632, 20.0
        %v641 = vmin.f32 %v633, 20.0
        %v642 = vmin.f32 %v634, 20.0
        %v643 = vld [vmem:[%s2] sm:$0xff]
        %v644 = vstv %s289
        %vm645 = vcmp.ge.s32.totalorder %v643, %v644
        %v646 = vsel %vm645, 1, 0
        %v647 = vlaneseq
        %v648 = vshrl.u32 %v647, 7
        %v649 = vsub.s32 0, %v648
        %v650 = vrot.slane %v646, %v649
        %v651 = vlaneseq
        %v652 = vshrl.u32 %v651, 7
        %v653 = vsub.s32 1, %v652
        %v654 = vrot.slane %v646, %v653
        %v655 = vlaneseq
        %v656 = vshrl.u32 %v655, 7
        %v657 = vsub.s32 2, %v656
        %v658 = vrot.slane %v646, %v657
        %v659 = vlaneseq
        %v660 = vshrl.u32 %v659, 7
        %v661 = vsub.s32 3, %v660
        %v662 = vrot.slane %v646, %v661
        %v663 = vlaneseq
        %v664 = vshrl.u32 %v663, 7
        %v665 = vsub.s32 4, %v664
        %v666 = vrot.slane %v646, %v665
        %v667 = vlaneseq
        %v668 = vshrl.u32 %v667, 7
        %v669 = vsub.s32 5, %v668
        %v670 = vrot.slane %v646, %v669
        %v671 = vlaneseq
        %v672 = vshrl.u32 %v671, 7
        %v673 = vsub.s32 6, %v672
        %v674 = vrot.slane %v646, %v673
        %v675 = vlaneseq
        %v676 = vshrl.u32 %v675, 7
        %v677 = vsub.s32 7, %v676
        %v678 = vrot.slane %v646, %v677
        %vm679 = vcmp.eq.s32.totalorder %v650, 1
        %vm680 = vcmp.eq.s32.totalorder %v654, 1
        %vm681 = vcmp.eq.s32.totalorder %v658, 1
        %vm682 = vcmp.eq.s32.totalorder %v662, 1
        %vm683 = vcmp.eq.s32.totalorder %v666, 1
        %vm684 = vcmp.eq.s32.totalorder %v670, 1
        %vm685 = vcmp.eq.s32.totalorder %v674, 1
        %vm686 = vcmp.eq.s32.totalorder %v678, 1
        %v687 = vsel %vm679, 0.0, %v635
        %v688 = vsel %vm680, 0.0, %v636
        %v689 = vsel %vm681, 0.0, %v637
        %v690 = vsel %vm682, 0.0, %v638
        %v691 = vsel %vm683, 0.0, %v639
        %v692 = vsel %vm684, 0.0, %v640
        %v693 = vsel %vm685, 0.0, %v641
        %v694 = vsel %vm686, 0.0, %v642
        %695 = vst [vmem:[#allocation2] sm:$0xff] %v687
        %696 = vst [vmem:[#allocation2 + $0x8] sm:$0xff] %v688
        %697 = vst [vmem:[#allocation2 + $0x10] sm:$0xff] %v689
        %698 = vst [vmem:[#allocation2 + $0x18] sm:$0xff] %v690
        %699 = vst [vmem:[#allocation2 + $0x20] sm:$0xff] %v691
        %700 = vst [vmem:[#allocation2 + $0x28] sm:$0xff] %v692
        %701 = vst [vmem:[#allocation2 + $0x30] sm:$0xff] %v693
        %702 = vst [vmem:[#allocation2 + $0x38] sm:$0xff] %v694
        %vm703 = vcmask 64512
        %704 = vst.msk [vmem:[#allocation3] sm:$0xff] %vm703, 0.0
        %v705 = vld [vmem:[#allocation2 + $0x8] sm:$0xff]
        %706 = vst.msk [vmem:[#allocation3 + $0x8] sm:$0xff] %vm703, %v705
        %v707 = vld [vmem:[#allocation2 + $0x18] sm:$0xff]
        %708 = vst.msk [vmem:[#allocation3 + $0x10] sm:$0xff] %vm703, %v707
        %v709 = vld [vmem:[#allocation2 + $0x28] sm:$0xff]
        %710 = vst.msk [vmem:[#allocation3 + $0x18] sm:$0xff] %vm703, %v709
        %711 = vst.msk [vmem:[#allocation3 + $0x20] sm:$0xff] %vm703, 0.0
        %v712 = vld [vmem:[#allocation2 + $0x8] sm:$0xff]
        %714 = vrot.lane.b32.xlu0 %v712, 127
        %v715 = vpop.permute.xlu0 %714
        %717 = vst.msk [vmem:[#allocation3 + $0x28] sm:$0xff] %vm703, %v715
        %v718 = vld [vmem:[#allocation2 + $0x18] sm:$0xff]
        %720 = vrot.lane.b32.xlu0 %v718, 127
        %v721 = vpop.permute.xlu0 %720
        %723 = vst.msk [vmem:[#allocation3 + $0x30] sm:$0xff] %vm703, %v721
        %v724 = vld [vmem:[#allocation2 + $0x28] sm:$0xff]
        %726 = vrot.lane.b32.xlu0 %v724, 127
        %v727 = vpop.permute.xlu0 %726
        %729 = vst.msk [vmem:[#allocation3 + $0x38] sm:$0xff] %vm703, %v727
        %730 = vst.msk [vmem:[#allocation3 + $0x40] sm:$0xff] %vm703, 0.0
        %v731 = vld [vmem:[#allocation2 + $0x8] sm:$0xff]
        %733 = vrot.lane.b32.xlu0 %v731, 126
        %v734 = vpop.permute.xlu0 %733
        %736 = vst.msk [vmem:[#allocation3 + $0x48] sm:$0xff] %vm703, %v734
        %v737 = vld [vmem:[#allocation2 + $0x18] sm:$0xff]
        %739 = vrot.lane.b32.xlu0 %v737, 126
        %v740 = vpop.permute.xlu0 %739
        %742 = vst.msk [vmem:[#allocation3 + $0x50] sm:$0xff] %vm703, %v740
        %v743 = vld [vmem:[#allocation2 + $0x28] sm:$0xff]
        %745 = vrot.lane.b32.xlu0 %v743, 126
        %v746 = vpop.permute.xlu0 %745
        %748 = vst.msk [vmem:[#allocation3 + $0x58] sm:$0xff] %vm703, %v746
        %v749 = vld [vmem:[#allocation2] sm:$0xff]
        %750 = vst.msk [vmem:[#allocation3 + $0x60] sm:$0xff] %vm703, %v749
        %v751 = vld [vmem:[#allocation2 + $0x10] sm:$0xff]
        %752 = vst.msk [vmem:[#allocation3 + $0x68] sm:$0xff] %vm703, %v751
        %v753 = vld [vmem:[#allocation2 + $0x20] sm:$0xff]
        %754 = vst.msk [vmem:[#allocation3 + $0x70] sm:$0xff] %vm703, %v753
        %v755 = vld [vmem:[#allocation2 + $0x30] sm:$0xff]
        %756 = vst.msk [vmem:[#allocation3 + $0x78] sm:$0xff] %vm703, %v755
        %v757 = vld [vmem:[#allocation2] sm:$0xff]
        %759 = vrot.lane.b32.xlu0 %v757, 127
        %v760 = vpop.permute.xlu0 %759
        %762 = vst.msk [vmem:[#allocation3 + $0x80] sm:$0xff] %vm703, %v760
        %v763 = vld [vmem:[#allocation2 + $0x10] sm:$0xff]
        %765 = vrot.lane.b32.xlu0 %v763, 127
        %v766 = vpop.permute.xlu0 %765
        %768 = vst.msk [vmem:[#allocation3 + $0x88] sm:$0xff] %vm703, %v766
        %v769 = vld [vmem:[#allocation2 + $0x20] sm:$0xff]
        %771 = vrot.lane.b32.xlu0 %v769, 127
        %v772 = vpop.permute.xlu0 %771
        %774 = vst.msk [vmem:[#allocation3 + $0x90] sm:$0xff] %vm703, %v772
        %v775 = vld [vmem:[#allocation2 + $0x30] sm:$0xff]
        %777 = vrot.lane.b32.xlu0 %v775, 127
        %v778 = vpop.permute.xlu0 %777
        %780 = vst.msk [vmem:[#allocation3 + $0x98] sm:$0xff] %vm703, %v778
        %v781 = vld [vmem:[#allocation2] sm:$0xff]
        %783 = vrot.lane.b32.xlu0 %v781, 126
        %v784 = vpop.permute.xlu0 %783
        %786 = vst.msk [vmem:[#allocation3 + $0xa0] sm:$0xff] %vm703, %v784
        %v787 = vld [vmem:[#allocation2 + $0x10] sm:$0xff]
        %789 = vrot.lane.b32.xlu0 %v787, 126
        %v790 = vpop.permute.xlu0 %789
        %792 = vst.msk [vmem:[#allocation3 + $0xa8] sm:$0xff] %vm703, %v790
        %v793 = vld [vmem:[#allocation2 + $0x20] sm:$0xff]
        %795 = vrot.lane.b32.xlu0 %v793, 126
        %v796 = vpop.permute.xlu0 %795
        %798 = vst.msk [vmem:[#allocation3 + $0xb0] sm:$0xff] %vm703, %v796
        %v799 = vld [vmem:[#allocation2 + $0x30] sm:$0xff]
        %801 = vrot.lane.b32.xlu0 %v799, 126
        %v802 = vpop.permute.xlu0 %801
        %804 = vst.msk [vmem:[#allocation3 + $0xb8] sm:$0xff] %vm703, %v802
        %v805 = vld [vmem:[#allocation2 + $0x8] sm:$0xff]
        %806 = vst.msk [vmem:[#allocation3 + $0xc0] sm:$0xff] %vm703, %v805
        %v807 = vld [vmem:[#allocation2 + $0x18] sm:$0xff]
        %808 = vst.msk [vmem:[#allocation3 + $0xc8] sm:$0xff] %vm703, %v807
        %v809 = vld [vmem:[#allocation2 + $0x28] sm:$0xff]
        %810 = vst.msk [vmem:[#allocation3 + $0xd0] sm:$0xff] %vm703, %v809
        %v811 = vld [vmem:[#allocation2 + $0x38] sm:$0xff]
        %812 = vst.msk [vmem:[#allocation3 + $0xd8] sm:$0xff] %vm703, %v811
        %v813 = vld [vmem:[#allocation2 + $0x8] sm:$0xff]
        %815 = vrot.lane.b32.xlu0 %v813, 127
        %v816 = vpop.permute.xlu0 %815
        %818 = vst.msk [vmem:[#allocation3 + $0xe0] sm:$0xff] %vm703, %v816
        %v819 = vld [vmem:[#allocation2 + $0x18] sm:$0xff]
        %821 = vrot.lane.b32.xlu0 %v819, 127
        %v822 = vpop.permute.xlu0 %821
        %824 = vst.msk [vmem:[#allocation3 + $0xe8] sm:$0xff] %vm703, %v822
        %v825 = vld [vmem:[#allocation2 + $0x28] sm:$0xff]
        %827 = vrot.lane.b32.xlu0 %v825, 127
        %v828 = vpop.permute.xlu0 %827
        %830 = vst.msk [vmem:[#allocation3 + $0xf0] sm:$0xff] %vm703, %v828
        %v831 = vld [vmem:[#allocation2 + $0x38] sm:$0xff]
        %833 = vrot.lane.b32.xlu0 %v831, 127
        %v834 = vpop.permute.xlu0 %833
        %836 = vst.msk [vmem:[#allocation3 + $0xf8] sm:$0xff] %vm703, %v834
        %v837 = vld [vmem:[#allocation2 + $0x8] sm:$0xff]
        %839 = vrot.lane.b32.xlu0 %v837, 126
        %v840 = vpop.permute.xlu0 %839
        %842 = vst.msk [vmem:[#allocation3 + $0x100] sm:$0xff] %vm703, %v840
        %v843 = vld [vmem:[#allocation2 + $0x18] sm:$0xff]
        %845 = vrot.lane.b32.xlu0 %v843, 126
        %v846 = vpop.permute.xlu0 %845
        %848 = vst.msk [vmem:[#allocation3 + $0x108] sm:$0xff] %vm703, %v846
        %v849 = vld [vmem:[#allocation2 + $0x28] sm:$0xff]
        %851 = vrot.lane.b32.xlu0 %v849, 126
        %v852 = vpop.permute.xlu0 %851
        %854 = vst.msk [vmem:[#allocation3 + $0x110] sm:$0xff] %vm703, %v852
        %v855 = vld [vmem:[#allocation2 + $0x38] sm:$0xff]
        %857 = vrot.lane.b32.xlu0 %v855, 126
        %v858 = vpop.permute.xlu0 %857
        %860 = vst.msk [vmem:[#allocation3 + $0x118] sm:$0xff] %vm703, %v858
        %v861 = vld [vmem:[%s7] sm:$0xff]
        %v862 = vld [vmem:[#allocation3] sm:$0xff]
        %v863 = vld [vmem:[#allocation3 + $0x8] sm:$0xff]
        %v864 = vld [vmem:[#allocation3 + $0x10] sm:$0xff]
        %v865 = vld [vmem:[#allocation3 + $0x18] sm:$0xff]
        %v866 = vld [vmem:[#allocation3 + $0x20] sm:$0xff]
        %v867 = vld [vmem:[#allocation3 + $0x28] sm:$0xff]
        %v868 = vld [vmem:[#allocation3 + $0x30] sm:$0xff]
        %v869 = vld [vmem:[#allocation3 + $0x38] sm:$0xff]
        %v870 = vld [vmem:[#allocation3 + $0x40] sm:$0xff]
        %v871 = vld [vmem:[#allocation3 + $0x48] sm:$0xff]
        %v872 = vld [vmem:[#allocation3 + $0x50] sm:$0xff]
        %v873 = vld [vmem:[#allocation3 + $0x58] sm:$0xff]
        %v874 = vld [vmem:[#allocation3 + $0x60] sm:$0xff]
        %v875 = vld [vmem:[#allocation3 + $0x68] sm:$0xff]
        %v876 = vld [vmem:[#allocation3 + $0x70] sm:$0xff]
        %v877 = vld [vmem:[#allocation3 + $0x78] sm:$0xff]
        %v878 = vld [vmem:[#allocation3 + $0x80] sm:$0xff]
        %v879 = vld [vmem:[#allocation3 + $0x88] sm:$0xff]
        %v880 = vld [vmem:[#allocation3 + $0x90] sm:$0xff]
        %v881 = vld [vmem:[#allocation3 + $0x98] sm:$0xff]
        %v882 = vld [vmem:[#allocation3 + $0xa0] sm:$0xff]
        %v883 = vld [vmem:[#allocation3 + $0xa8] sm:$0xff]
        %v884 = vld [vmem:[#allocation3 + $0xb0] sm:$0xff]
        %v885 = vld [vmem:[#allocation3 + $0xb8] sm:$0xff]
        %v886 = vld [vmem:[#allocation3 + $0xc0] sm:$0xff]
        %v887 = vld [vmem:[#allocation3 + $0xc8] sm:$0xff]
        %v888 = vld [vmem:[#allocation3 + $0xd0] sm:$0xff]
        %v889 = vld [vmem:[#allocation3 + $0xd8] sm:$0xff]
        %v890 = vld [vmem:[#allocation3 + $0xe0] sm:$0xff]
        %v891 = vld [vmem:[#allocation3 + $0xe8] sm:$0xff]
        %v892 = vld [vmem:[#allocation3 + $0xf0] sm:$0xff]
        %v893 = vld [vmem:[#allocation3 + $0xf8] sm:$0xff]
        %v894 = vld [vmem:[#allocation3 + $0x100] sm:$0xff]
        %v895 = vld [vmem:[#allocation3 + $0x108] sm:$0xff]
        %v896 = vld [vmem:[#allocation3 + $0x110] sm:$0xff]
        %v897 = vld [vmem:[#allocation3 + $0x118] sm:$0xff]
        %v898 = vld [vmem:[%s8] sm:$0xff]
        %900 = vset.pattern.permute.xlu0 0
        %901 = vperm.xlu0 %900, %v898
        %v902 = vpop.permute.xlu0 %901
        %vm904 = vcmask 588800
        %v906 = vsel %vm904, %v861, 0
        %908 = vmatprep.subr.mxu0 0.0
        %909 = vmatpush1.msra.mxu0 0.0
        %910 = vmatprep.subr.mxu0 0.0
        %911 = vmatpush1.msra.mxu0 0.0
        %912 = vmatprep.subr.mxu0 0.0
        %913 = vmatpush1.msra.mxu0 0.0
        %914 = vmatprep.subr.mxu0 0.0
        %915 = vmatpush1.msra.mxu0 0.0
        %916 = vmatprep.subr.mxu0 0.0
        %917 = vmatpush1.msra.mxu0 0.0
        %918 = vmatprep.subr.mxu0 0.0
        %919 = vmatpush1.msra.mxu0 0.0
        %920 = vmatprep.subr.mxu0 0.0
        %921 = vmatpush1.msra.mxu0 0.0
        %922 = vmatprep.subr.mxu0 %v895
        %923 = vmatpush1.msra.mxu0 %v894
        %924 = vmatprep.subr.mxu0 %v891
        %925 = vmatpush1.msra.mxu0 %v890
        %926 = vmatprep.subr.mxu0 %v887
        %927 = vmatpush1.msra.mxu0 %v886
        %928 = vmatprep.subr.mxu0 %v883
        %929 = vmatpush1.msra.mxu0 %v882
        %930 = vmatprep.subr.mxu0 %v879
        %931 = vmatpush1.msra.mxu0 %v878
        %932 = vmatprep.subr.mxu0 %v875
        %933 = vmatpush1.msra.mxu0 %v874
        %934 = vmatprep.subr.mxu0 %v871
        %935 = vmatpush1.msra.mxu0 %v870
        %936 = vmatprep.subr.mxu0 %v867
        %937 = vmatpush1.msra.mxu0 %v866
        %938 = vmatprep.subr.mxu0 %v863
        %939 = vmatpush1.msra.mxu0 %v862
        %940 = vmatprep.subr.mxu0 0.0
        %941 = vmatpush2.msra.mxu0 0.0
        %942 = vmatprep.subr.mxu0 0.0
        %943 = vmatpush2.msra.mxu0 0.0
        %944 = vmatprep.subr.mxu0 0.0
        %945 = vmatpush2.msra.mxu0 0.0
        %946 = vmatprep.subr.mxu0 0.0
        %947 = vmatpush2.msra.mxu0 0.0
        %948 = vmatprep.subr.mxu0 0.0
        %949 = vmatpush2.msra.mxu0 0.0
        %950 = vmatprep.subr.mxu0 0.0
        %951 = vmatpush2.msra.mxu0 0.0
        %952 = vmatprep.subr.mxu0 0.0
        %953 = vmatpush2.msra.mxu0 0.0
        %954 = vmatprep.subr.mxu0 0.0
        %955 = vmatpush2.msra.mxu0 0.0
        %956 = vmatprep.subr.mxu0 0.0
        %957 = vmatpush2.msra.mxu0 0.0
        %958 = vmatprep.subr.mxu0 0.0
        %959 = vmatpush2.msra.mxu0 0.0
        %960 = vmatprep.subr.mxu0 0.0
        %961 = vmatpush2.msra.mxu0 0.0
        %962 = vmatprep.subr.mxu0 0.0
        %963 = vmatpush2.msra.mxu0 0.0
        %964 = vmatprep.subr.mxu0 0.0
        %965 = vmatpush2.msra.mxu0 0.0
        %966 = vmatprep.subr.mxu0 0.0
        %967 = vmatpush2.msra.mxu0 0.0
        %968 = vmatprep.subr.mxu0 0.0
        %969 = vmatpush2.msra.mxu0 0.0
        %970 = vmatprep.subr.mxu0 0.0
        %971 = vmatpush2.msra.mxu0 0.0
        %972 = vmatprep.mubr.f32.mxu0 0.0
        %973 = vmatmul.mubr.f32.gmra.mxu0 %v906
        %v974 = vpop.f32.mrf.mxu0
        %v975 = vadd.f32 %v902, %v974
        %v976 = vpop.f32.mrf.mxu0
        %v977 = vadd.f32 %v902, %v976
        %978 = vdwg.mxu0
        %979 = vmatprep.subr.mxu0 0.0
        %980 = vmatpush1.msra.mxu0 0.0
        %981 = vmatprep.subr.mxu0 0.0
        %982 = vmatpush1.msra.mxu0 0.0
        %983 = vmatprep.subr.mxu0 0.0
        %984 = vmatpush1.msra.mxu0 0.0
        %985 = vmatprep.subr.mxu0 0.0
        %986 = vmatpush1.msra.mxu0 0.0
        %987 = vmatprep.subr.mxu0 0.0
        %988 = vmatpush1.msra.mxu0 0.0
        %989 = vmatprep.subr.mxu0 0.0
        %990 = vmatpush1.msra.mxu0 0.0
        %991 = vmatprep.subr.mxu0 0.0
        %992 = vmatpush1.msra.mxu0 0.0
        %993 = vmatprep.subr.mxu0 %v897
        %994 = vmatpush1.msra.mxu0 %v896
        %995 = vmatprep.subr.mxu0 %v893
        %996 = vmatpush1.msra.mxu0 %v892
        %997 = vmatprep.subr.mxu0 %v889
        %998 = vmatpush1.msra.mxu0 %v888
        %999 = vmatprep.subr.mxu0 %v885
        %1000 = vmatpush1.msra.mxu0 %v884
        %1001 = vmatprep.subr.mxu0 %v881
        %1002 = vmatpush1.msra.mxu0 %v880
        %1003 = vmatprep.subr.mxu0 %v877
        %1004 = vmatpush1.msra.mxu0 %v876
        %1005 = vmatprep.subr.mxu0 %v873
        %1006 = vmatpush1.msra.mxu0 %v872
        %1007 = vmatprep.subr.mxu0 %v869
        %1008 = vmatpush1.msra.mxu0 %v868
        %1009 = vmatprep.subr.mxu0 %v865
        %1010 = vmatpush1.msra.mxu0 %v864
        %1011 = vmatprep.subr.mxu0 0.0
        %1012 = vmatpush2.msra.mxu0 0.0
        %1013 = vmatprep.subr.mxu0 0.0
        %1014 = vmatpush2.msra.mxu0 0.0
        %1015 = vmatprep.subr.mxu0 0.0
        %1016 = vmatpush2.msra.mxu0 0.0
        %1017 = vmatprep.subr.mxu0 0.0
        %1018 = vmatpush2.msra.mxu0 0.0
        %1019 = vmatprep.subr.mxu0 0.0
        %1020 = vmatpush2.msra.mxu0 0.0
        %1021 = vmatprep.subr.mxu0 0.0
        %1022 = vmatpush2.msra.mxu0 0.0
        %1023 = vmatprep.subr.mxu0 0.0
        %1024 = vmatpush2.msra.mxu0 0.0
        %1025 = vmatprep.subr.mxu0 0.0
        %1026 = vmatpush2.msra.mxu0 0.0
        %1027 = vmatprep.subr.mxu0 0.0
        %1028 = vmatpush2.msra.mxu0 0.0
        %1029 = vmatprep.subr.mxu0 0.0
        %1030 = vmatpush2.msra.mxu0 0.0
        %1031 = vmatprep.subr.mxu0 0.0
        %1032 = vmatpush2.msra.mxu0 0.0
        %1033 = vmatprep.subr.mxu0 0.0
        %1034 = vmatpush2.msra.mxu0 0.0
        %1035 = vmatprep.subr.mxu0 0.0
        %1036 = vmatpush2.msra.mxu0 0.0
        %1037 = vmatprep.subr.mxu0 0.0
        %1038 = vmatpush2.msra.mxu0 0.0
        %1039 = vmatprep.subr.mxu0 0.0
        %1040 = vmatpush2.msra.mxu0 0.0
        %1041 = vmatprep.subr.mxu0 0.0
        %1042 = vmatpush2.msra.mxu0 0.0
        %1043 = vmatprep.mubr.f32.mxu0 0.0
        %1044 = vmatmul.mubr.f32.gmra.mxu0 %v906
        %v1045 = vpop.f32.mrf.mxu0
        %v1046 = vadd.f32 %v902, %v1045
        %v1047 = vpop.f32.mrf.mxu0
        %v1048 = vadd.f32 %v902, %v1047
        %1049 = vdwg.mxu0
        %v1050 = vmax.f32 %v975, 0.0
        %v1051 = vmax.f32 %v977, 0.0
        %v1052 = vmax.f32 %v1046, 0.0
        %v1053 = vmax.f32 %v1048, 0.0
        %v1054 = vmin.f32 %v1050, 20.0
        %v1055 = vmin.f32 %v1051, 20.0
        %v1056 = vmin.f32 %v1052, 20.0
        %v1057 = vmin.f32 %v1053, 20.0
        %v1058 = vld [vmem:[%s3] sm:$0xf]
        %v1059 = vstv %s290
        %vm1060 = vcmp.ge.s32.totalorder %v1058, %v1059
        %v1061 = vsel %vm1060, 1, 0
        %v1062 = vlaneseq
        %v1063 = vshrl.u32 %v1062, 7
        %v1064 = vsub.s32 0, %v1063
        %v1065 = vrot.slane %v1061, %v1064
        %v1066 = vlaneseq
        %v1067 = vshrl.u32 %v1066, 7
        %v1068 = vsub.s32 1, %v1067
        %v1069 = vrot.slane %v1061, %v1068
        %v1070 = vlaneseq
        %v1071 = vshrl.u32 %v1070, 7
        %v1072 = vsub.s32 2, %v1071
        %v1073 = vrot.slane %v1061, %v1072
        %v1074 = vlaneseq
        %v1075 = vshrl.u32 %v1074, 7
        %v1076 = vsub.s32 3, %v1075
        %v1077 = vrot.slane %v1061, %v1076
        %vm1078 = vcmp.eq.s32.totalorder %v1065, 1
        %vm1079 = vcmp.eq.s32.totalorder %v1069, 1
        %vm1080 = vcmp.eq.s32.totalorder %v1073, 1
        %vm1081 = vcmp.eq.s32.totalorder %v1077, 1
        %v1082 = vsel %vm1078, 0.0, %v1054
        %v1083 = vsel %vm1079, 0.0, %v1055
        %v1084 = vsel %vm1080, 0.0, %v1056
        %v1085 = vsel %vm1081, 0.0, %v1057
        %1086 = vst [vmem:[%s283] sm:$0xff] %v1082
        %1087 = vst [vmem:[%s283 + $0x8] sm:$0xff] %v1083
        %1088 = vst [vmem:[%s283 + $0x10] sm:$0xff] %v1084
        %1089 = vst [vmem:[%s283 + $0x18] sm:$0xff] %v1085
        %s1090 = sand.u32 %s193, 1
        %s1091 = scalar_lea.sflag [#allocation8], %s1090
        %s1092 = sand.u32 %s193, 1
        %s1093 = smul.addr %s1092, 32
        %s1094 = scalar_lea.vmem [#allocation7], %s1093
        // Predicated region
        $region49: #{tpu_custom_call.1} parent=47 // pred_check
          %p1095 = pneg %p203
        $region50: #{tpu_custom_call.1} parent=47 // pred_check_branch
          %1097 = sbr.rel (%p1095) target = $region52
        $region51: #{tpu_custom_call.1} parent=47 // pred_region
          %s1099 = ssub.s32 512, 512
          %1100 = vsyncadd %s1091, %s1099
          %s1101 = smul.addr %s33, 4
          %s1102 = smul.addr %s1101, 128
          %s1103 = scalar_lea.hbm %s9, %s1102
          %s1105 = sshll.u32 %s1094, 4
          %s1106 = int_to_ptr.vmem [resolvable:$true] %s1105
          %1108 = dma.vmem_to_hbm [thread:$0]  %s1106, 512, %s1103, %s1091
        $region52: #{tpu_custom_call.1} parent=47 // pred_fallthru
          _
      $region48: #{tpu_custom_call.1} parent=5 // pred_fallthru
        _
      %p1109 = scmp.le.s32.totalorder 2, %s28
      // Predicated region
      $region53: #{tpu_custom_call.1} parent=5 // pred_check
        %p1110 = pneg %p1109
      $region54: #{tpu_custom_call.1} parent=5 // pred_check_branch
        %1112 = sbr.rel (%p1110) target = $region56
      $region55: #{tpu_custom_call.1} parent=5 // pred_region
        %s1113 = ssub.s32 %s28, 2
        // Predicated region
        $region57: #{tpu_custom_call.1} parent=55 // pred_check
          %p1114 = pneg %p209
        $region58: #{tpu_custom_call.1} parent=55 // pred_check_branch
          %1116 = sbr.rel (%p1114) target = $region60
        $region59: #{tpu_custom_call.1} parent=55 // pred_region
          %s1117 = sand.u32 %s194, 1
          %s1118 = scalar_lea.sflag [#allocation8], %s1117
          %s1119 = sand.u32 %s194, 1
          %s1120 = smul.addr %s1119, 32
          %s1121 = scalar_lea.vmem [#allocation7], %s1120
          %1122 = dma.done %s1118, 512
        $region60: #{tpu_custom_call.1} parent=55 // pred_fallthru
          _
      $region56: #{tpu_custom_call.1} parent=5 // pred_fallthru
        _
    $region6: #{tpu_custom_call.1} parent=1 // loop_footer
      %s32 = sadd.s32 1, %s28
    $region7: #{tpu_custom_call.1} parent=1 // loop_footer_branch
      %27 = sbr.rel target = $region3
    $region8: #{tpu_custom_call.1} parent=1 // loop_exit
      _
    %1123 = vsyncpa [#allocation8], 1
    %s1124 = scalar_lea.sflag [#allocation8], 1
    %1125 = vsyncpa %s1124, 1

</llo_original>
